<compile_context>
chip_gen: v6e
topology: v6e:2x2x1
jax: 0.10.0
libtpu: 0.0.40
codegen_flags: <defaults>
</compile_context>

<pallas_src>
import jax
import jax.numpy as jnp
from jax.experimental import pallas as pl
from jax.experimental.pallas import tpu as pltpu


def _round_up(x, m):
    return (x + m - 1) // m * m


def _rgcn_stack_kernel(x_ref, a_ref, dinv_ref, w_ref, b_ref, o_ref,
                       h_ref, msg_ref, acc_ref):
    """One grid step == (layer l, relation r, destination-row tile t)."""
    l = pl.program_id(0)
    r = pl.program_id(1)
    t = pl.program_id(2)
    n_rel = pl.num_programs(1)

    tm = o_ref.shape[0]                       # static dst-tile rows
    row0 = pl.multiple_of(t * tm, tm)         # aligned dynamic row offset

    # Seed the resident f32 feature carry once (layer 0, first step).
    @pl.when((l == 0) & (r == 0) & (t == 0))
    def _():
        h_ref[...] = x_ref[...]

    # msg_r = h @ W_r : computed once per (layer, relation), reused by every
    # destination tile of that relation.  bf16 MXU operands, f32 accumulate.
    @pl.when(t == 0)
    def _():
        msg_ref[...] = jnp.dot(
            h_ref[...].astype(jnp.bfloat16), w_ref[...],
            preferred_element_type=jnp.float32).astype(jnp.bfloat16)

    # Neighbourhood aggregation for this (relation, dst tile).  The binary
    # int8 adjacency is exact in bf16; the 1/in_degree (norm='right') row
    # scale is applied in f32 afterwards (no bf16 rounding of 1/deg).
    a_bf = a_ref[...].astype(jnp.float32).astype(jnp.bfloat16)
    agg = jnp.dot(a_bf, msg_ref[...], preferred_element_type=jnp.float32)
    agg = agg * dinv_ref[...]                 # (tm, 1) f32 broadcast scale

    # Per-relation accumulation (contraction axis r): init at r==0.
    @pl.when(r == 0)
    def _():
        acc_ref[pl.ds(row0, tm), :] = agg

    @pl.when(r != 0)
    def _():
        acc_ref[pl.ds(row0, tm), :] = acc_ref[pl.ds(row0, tm), :] + agg

    # Layer epilogue: bias (pre-summed over relations) + ReLU in f32; update
    # the resident h rows and emit this tile (later layers' writes land later
    # in HBM, so the final contents are the last layer's features).
    @pl.when(r == n_rel - 1)
    def _():
        new_h = jnp.maximum(acc_ref[pl.ds(row0, tm), :] + b_ref[...], 0.0)
        h_ref[pl.ds(row0, tm), :] = new_h
        o_ref[...] = new_h.astype(o_ref.dtype)


def gnn_encoder_pallas(adj, feat, weights, biases):
    """Fused GNN_encoder forward.

    adj:     (R, N, N) binary {0,1} adjacency, laid out (dst, src)
    feat:    (N, Fin) node features (single node type == category)
    weights: list of L arrays, weights[l] is (R, Fin_l, Fout_l)
    biases:  list of L arrays, biases[l]  is (R, Fout_l)
    returns  (N, Fout_last)
    """
    R, N, _ = adj.shape
    L = len(weights)
    f_in0 = weights[0].shape[1]
    f_out_last = weights[-1].shape[2]

    # Lane-pad features to 128; pad nodes to 128 and pick MXU-friendly tiles.
    all_f = [w.shape[1] for w in weights] + [w.shape[2] for w in weights]
    Fp = _round_up(max(all_f), 128)
    Np = _round_up(N, 128)
    TM = 256 if Np % 256 == 0 else 128        # 256-deep MXU on v6e/v7x
    T = Np // TM

    # Stacked zero-padded parameters: (L, R, Fp, Fp) weights (bf16 MXU
    # operands); per-layer bias summed over relations (each relation's
    # GraphConv adds its own bias to every destination node).
    w_all = jnp.zeros((L, R, Fp, Fp), jnp.float32)
    b_all = jnp.zeros((L, 1, Fp), jnp.float32)
    for i, (w, b) in enumerate(zip(weights, biases)):
        fi, fo = w.shape[1], w.shape[2]
        w_all = w_all.at[i, :, :fi, :fo].set(w)
        b_all = b_all.at[i, 0, :fo].set(b.sum(axis=0))
    w_all = w_all.astype(jnp.bfloat16)

    # Input features stay f32 (seed of the carried h, read once).
    x_pad = jnp.zeros((Np, Fp), jnp.float32).at[:N, :f_in0].set(feat)

    # Binary adjacency as int8 (exact, half the bytes of bf16); per-relation
    # 1/in_degree in f32 (clamped to >= 1, as DGL effectively requires).
    a_pad = jnp.zeros((R, Np, Np), jnp.int8)
    a_pad = a_pad.at[:, :N, :N].set(adj.astype(jnp.int8))
    deg = jnp.maximum(adj.sum(axis=2), 1.0)                 # (R, N)
    dinv = jnp.ones((R, Np, 1), jnp.float32).at[:, :N, 0].set(1.0 / deg)

    # Explicit VMEM budget from the actual block / scratch sizes
    # (double-buffered pipeline blocks + persistent scratch), with headroom.
    vmem_bytes = (
        2 * TM * Np * 1            # A tile (int8), double-buffered
        + 2 * Fp * Fp * 2          # W_{l,r} (bf16)
        + 2 * TM * 128 * 4         # 1/deg tile (lane-padded f32)
        + 2 * 8 * Fp * 4           # bias (sublane-padded f32)
        + 2 * Np * Fp * 4          # x (f32, constant block)
        + 2 * TM * Fp * 4          # output tile (f32)
        + Np * Fp * 2              # msg scratch (bf16)
        + 2 * Np * Fp * 4          # h + acc scratch (f32)
    )
    vmem_limit = min(max(2 * vmem_bytes, 32 << 20), 64 << 20)  # v7x phys 64MiB

    flops = int(2 * L * R * Np * Fp * (Fp + Np))
    bytes_accessed = int(
        L * R * Np * Np * 1        # A re-streamed every layer
        + L * R * Fp * Fp * 2      # weights
        + Np * Fp * 4              # x
        + L * R * Np * Fp * 4      # output-tile writebacks (incl. revisits)
        + L * R * Np * 4)          # 1/deg

    grid_spec = pltpu.PrefetchScalarGridSpec(
        num_scalar_prefetch=0,
        grid=(L, R, T),
        in_specs=[
            # x: f32 seed, constant block (DMA'd once, read only at layer 0).
            pl.BlockSpec((Np, Fp), lambda l, r, t: (0, 0)),
            # A_r destination-row tile: streamed, pipeline double-buffers it.
            pl.BlockSpec((None, TM, Np), lambda l, r, t: (r, t, 0)),
            # 1/in_degree rows for this (relation, dst tile), f32.
            pl.BlockSpec((None, TM, 1), lambda l, r, t: (r, t, 0)),
            # W_{l,r}: one (Fp, Fp) slab per (layer, relation).
            pl.BlockSpec((None, None, Fp, Fp), lambda l, r, t: (l, r, 0, 0)),
            # b_l: per-layer bias (already summed over relations).
            pl.BlockSpec((None, 1, Fp), lambda l, r, t: (l, 0, 0)),
        ],
        out_specs=pl.BlockSpec((TM, Fp), lambda l, r, t: (t, 0)),
        scratch_shapes=[
            pltpu.VMEM((Np, Fp), jnp.float32),    # resident h (carried layer->layer)
            pltpu.VMEM((Np, Fp), jnp.bfloat16),   # msg_r for all source rows
            pltpu.VMEM((Np, Fp), jnp.float32),    # per-layer relation accumulator
        ],
    )

    out = pl.pallas_call(
        _rgcn_stack_kernel,
        out_shape=jax.ShapeDtypeStruct((Np, Fp), jnp.float32),
        grid_spec=grid_spec,
        compiler_params=pltpu.CompilerParams(
            # All axes carry state through scratch (h / msg / acc) -> sequential.
            dimension_semantics=("arbitrary", "arbitrary", "arbitrary"),
            vmem_limit_bytes=int(vmem_limit),
        ),
        cost_estimate=pl.CostEstimate(
            flops=flops, transcendentals=0, bytes_accessed=bytes_accessed),
    )(x_pad, a_pad, dinv, w_all, b_all)

    return out[:N, :f_out_last]


def gnn_encoder_ref_f32(adj, feat, weights, biases):
    """Pure-JAX full-precision reference."""
    hp = jax.lax.Precision.HIGHEST
    deg = jnp.maximum(adj.sum(axis=2, keepdims=True), 1.0)   # (R, N, 1)
    h = feat
    for w, b in zip(weights, biases):
        msg = jnp.einsum("nf,rfo->rno", h, w, precision=hp)
        agg = jnp.einsum("rds,rso->rdo", adj, msg, precision=hp) / deg
        h = jax.nn.relu((agg + b[:, None, :]).sum(axis=0))
    return h


def gnn_encoder_ref_bf16(adj, feat, weights, biases):
    """Reference emulating the kernel's bf16-operand / f32-accum arithmetic
    (binary A exact, 1/deg applied in f32)."""
    bf = lambda x: x.astype(jnp.bfloat16).astype(jnp.float32)
    deg = jnp.maximum(adj.sum(axis=2, keepdims=True), 1.0)
    dinv = 1.0 / deg
    a = bf(adj)          # binary values are exact in bf16
    h = feat
    for w, b in zip(weights, biases):
        msg = jnp.einsum("nf,rfo->rno", bf(h), bf(w))
        agg = jnp.einsum("rds,rso->rdo", a, bf(msg)) * dinv
        h = jax.nn.relu((agg + b[:, None, :]).sum(axis=0))
    return h


if __name__ == "__main__":
    # Small shapes consistent with the module (single node type = category).
    # N=300 exercises node padding (-> 384) and the multi-tile dst axis (T=3).
    N = 300           # nodes
    R = 2             # relations (rel_names)
    in_feats = 32
    hid_feats = 64
    out_feats = 48
    layer_nums = 2

    key = jax.random.PRNGKey(0)
    k_feat, k_adj, k_w1, k_w2, k_b1, k_b2 = jax.random.split(key, 6)

    feat = jax.random.normal(k_feat, (N, in_feats), dtype=jnp.float32)

    # Random binary adjacency per relation, laid out (dst, src).
    adj = (jax.random.uniform(k_adj, (R, N, N)) < 0.05).astype(jnp.float32)

    # Per-relation GraphConv parameters for the 2-layer stack.
    w1 = 0.1 * jax.random.normal(k_w1, (R, in_feats, hid_feats), dtype=jnp.float32)
    w2 = 0.1 * jax.random.normal(k_w2, (R, hid_feats, out_feats), dtype=jnp.float32)
    b1 = 0.01 * jax.random.normal(k_b1, (R, hid_feats), dtype=jnp.float32)
    b2 = 0.01 * jax.random.normal(k_b2, (R, out_feats), dtype=jnp.float32)

    weights = [w1, w2]
    biases = [b1, b2]

    out = gnn_encoder_pallas(adj, feat, weights, biases)
    out = jax.block_until_ready(out)
    assert out.shape == (N, out_feats)

    # Tight check vs a reference mirroring the kernel's bf16/f32 numerics.
    ref_bf16 = gnn_encoder_ref_bf16(adj, feat, weights, biases)
    assert jnp.allclose(out, ref_bf16, atol=2e-2, rtol=2e-2), \
        "mismatch vs bf16-emulating reference"

    # Loose sanity check vs the full-f32 reference (bf16 operand rounding).
    ref_f32 = gnn_encoder_ref_f32(adj, feat, weights, biases)
    assert jnp.allclose(out, ref_f32, atol=1e-1, rtol=1e-1), \
        "mismatch vs f32 reference"

    print("KERNEL_OK")
</pallas_src>

<mosaic_0001>
module attributes {stable_mosaic.version = 11 : i64} {
  func.func @_rgcn_stack_kernel(%arg0: i32, %arg1: i32, %arg2: i32, %arg3: memref<384x128xf32, #tpu.memory_space<vmem>>, %arg4: memref<1x128x384xi8, #tpu.memory_space<vmem>>, %arg5: memref<1x128x1xf32, #tpu.memory_space<vmem>>, %arg6: memref<1x1x128x128xbf16, #tpu.memory_space<vmem>>, %arg7: memref<1x1x128xf32, #tpu.memory_space<vmem>>, %arg8: memref<128x128xf32, #tpu.memory_space<vmem>>, %arg9: memref<384x128xf32, #tpu.memory_space<vmem>>, %arg10: memref<384x128xbf16, #tpu.memory_space<vmem>>, %arg11: memref<384x128xf32, #tpu.memory_space<vmem>>) attributes {dimension_semantics = [#tpu.dimension_semantics<arbitrary>, #tpu.dimension_semantics<arbitrary>, #tpu.dimension_semantics<arbitrary>], iteration_bounds = array<i64: 2, 2, 3>, scalar_prefetch = 0 : i64, scratch_operands = 3 : i64, tpu.core_type = #tpu.core_type<tc>, window_params = [{pipeline_mode = #tpu.pipeline_mode<synchronous>, transform_indices = @transform_0, window_bounds = array<i64: 384, 128>}, {transform_indices = @transform_1, window_bounds = array<i64: 1, 128, 384>}, {transform_indices = @transform_2, window_bounds = array<i64: 1, 128, 1>}, {transform_indices = @transform_3, window_bounds = array<i64: 1, 1, 128, 128>}, {transform_indices = @transform_4, window_bounds = array<i64: 1, 1, 128>}, {transform_indices = @transform_5, window_bounds = array<i64: 128, 128>}]} {
    %c128_i32 = arith.constant 128 : i32
    %0 = arith.muli %arg2, %c128_i32 : i32
    %1 = tpu.assume_multiple %0, 128 : i32
    %c0_i32 = arith.constant 0 : i32
    %2 = arith.cmpi eq, %arg0, %c0_i32 : i32
    %c0_i32_0 = arith.constant 0 : i32
    %3 = arith.cmpi eq, %arg1, %c0_i32_0 : i32
    %4 = arith.andi %2, %3 : i1
    %c0_i32_1 = arith.constant 0 : i32
    %5 = arith.cmpi eq, %arg2, %c0_i32_1 : i32
    %6 = arith.andi %4, %5 : i1
    %7 = arith.extui %6 : i1 to i32
    %c0_i32_2 = arith.constant 0 : i32
    %8 = arith.cmpi ne, %7, %c0_i32_2 : i32
    scf.if %8 {
      %c0_17 = arith.constant 0 : index
      %c0_18 = arith.constant 0 : index
      %31 = vector.load %arg3[%c0_17, %c0_18] : memref<384x128xf32, #tpu.memory_space<vmem>>, vector<384x128xf32>
      %c0_19 = arith.constant 0 : index
      %c0_20 = arith.constant 0 : index
      %32 = vector.load %arg9[%c0_19, %c0_20] : memref<384x128xf32, #tpu.memory_space<vmem>>, vector<384x128xf32>
      tpu.vector_store %arg9[%c0_19, %c0_20], %31 {strides = array<i32>} : memref<384x128xf32, #tpu.memory_space<vmem>>, vector<384x128xf32>,
    } else {
    }
    %c0_i32_3 = arith.constant 0 : i32
    %9 = arith.cmpi eq, %arg2, %c0_i32_3 : i32
    %10 = arith.extui %9 : i1 to i32
    %c0_i32_4 = arith.constant 0 : i32
    %11 = arith.cmpi ne, %10, %c0_i32_4 : i32
    scf.if %11 {
      %c0_17 = arith.constant 0 : index
      %c0_18 = arith.constant 0 : index
      %31 = vector.load %arg9[%c0_17, %c0_18] : memref<384x128xf32, #tpu.memory_space<vmem>>, vector<384x128xf32>
      %32 = arith.truncf %31 : vector<384x128xf32> to vector<384x128xbf16>
      %c0_19 = arith.constant 0 : index
      %c0_20 = arith.constant 0 : index
      %c0_21 = arith.constant 0 : index
      %c0_22 = arith.constant 0 : index
      %33 = vector.load %arg6[%c0_19, %c0_20, %c0_21, %c0_22] : memref<1x1x128x128xbf16, #tpu.memory_space<vmem>>, vector<1x1x128x128xbf16>
      %34 = vector.shape_cast %33 : vector<1x1x128x128xbf16> to vector<128x128xbf16>
      %cst_23 = arith.constant dense<0.000000e+00> : vector<384x128xf32>
      %35 = tpu.matmul %32, %34, %cst_23 {dimension_numbers = #tpu.dot_dimension_numbers<[1], [0], [0], [1], [0, 0, 1, 1], [], []>} : vector<384x128xbf16>, vector<128x128xbf16>, vector<384x128xf32> -> vector<384x128xf32>
      %36 = arith.truncf %35 : vector<384x128xf32> to vector<384x128xbf16>
      %c0_24 = arith.constant 0 : index
      %c0_25 = arith.constant 0 : index
      %37 = vector.load %arg10[%c0_24, %c0_25] : memref<384x128xbf16, #tpu.memory_space<vmem>>, vector<384x128xbf16>
      tpu.vector_store %arg10[%c0_24, %c0_25], %36 {strides = array<i32>} : memref<384x128xbf16, #tpu.memory_space<vmem>>, vector<384x128xbf16>,
    } else {
    }
    %c0 = arith.constant 0 : index
    %c0_5 = arith.constant 0 : index
    %c0_6 = arith.constant 0 : index
    %12 = vector.load %arg4[%c0, %c0_5, %c0_6] : memref<1x128x384xi8, #tpu.memory_space<vmem>>, vector<1x128x384xi8>
    %13 = vector.shape_cast %12 : vector<1x128x384xi8> to vector<128x384xi8>
    %14 = arith.sitofp %13 : vector<128x384xi8> to vector<128x384xf32>
    %15 = arith.truncf %14 : vector<128x384xf32> to vector<128x384xbf16>
    %c0_7 = arith.constant 0 : index
    %c0_8 = arith.constant 0 : index
    %16 = vector.load %arg10[%c0_7, %c0_8] : memref<384x128xbf16, #tpu.memory_space<vmem>>, vector<384x128xbf16>
    %cst = arith.constant dense<0.000000e+00> : vector<128x128xf32>
    %17 = tpu.matmul %15, %16, %cst {dimension_numbers = #tpu.dot_dimension_numbers<[1], [0], [0], [1], [0, 0, 1, 1], [], []>} : vector<128x384xbf16>, vector<384x128xbf16>, vector<128x128xf32> -> vector<128x128xf32>
    %c0_9 = arith.constant 0 : index
    %c0_10 = arith.constant 0 : index
    %c0_11 = arith.constant 0 : index
    %18 = vector.load %arg5[%c0_9, %c0_10, %c0_11] : memref<1x128x1xf32, #tpu.memory_space<vmem>>, vector<1x128x1xf32>
    %19 = vector.shape_cast %18 : vector<1x128x1xf32> to vector<128x1xf32>
    %20 = vector.broadcast %19 : vector<128x1xf32> to vector<128x128xf32>
    %21 = arith.mulf %17, %20 : vector<128x128xf32>
    %c0_i32_12 = arith.constant 0 : i32
    %22 = arith.cmpi eq, %arg1, %c0_i32_12 : i32
    %23 = arith.extui %22 : i1 to i32
    %c0_i32_13 = arith.constant 0 : i32
    %24 = arith.cmpi ne, %23, %c0_i32_13 : i32
    scf.if %24 {
      %31 = arith.index_cast %1 : i32 to index
      %c0_17 = arith.constant 0 : index
      %32 = vector.load %arg11[%31, %c0_17] : memref<384x128xf32, #tpu.memory_space<vmem>>, vector<128x128xf32>
      tpu.vector_store %arg11[%31, %c0_17], %21 {strides = array<i32>} : memref<384x128xf32, #tpu.memory_space<vmem>>, vector<128x128xf32>,
    } else {
    }
    %c0_i32_14 = arith.constant 0 : i32
    %25 = arith.cmpi ne, %arg1, %c0_i32_14 : i32
    %26 = arith.extui %25 : i1 to i32
    %c0_i32_15 = arith.constant 0 : i32
    %27 = arith.cmpi ne, %26, %c0_i32_15 : i32
    scf.if %27 {
      %31 = arith.index_cast %1 : i32 to index
      %c0_17 = arith.constant 0 : index
      %32 = vector.load %arg11[%31, %c0_17] : memref<384x128xf32, #tpu.memory_space<vmem>>, vector<128x128xf32>
      %33 = arith.addf %32, %21 : vector<128x128xf32>
      %34 = arith.index_cast %1 : i32 to index
      %c0_18 = arith.constant 0 : index
      %35 = vector.load %arg11[%34, %c0_18] : memref<384x128xf32, #tpu.memory_space<vmem>>, vector<128x128xf32>
      tpu.vector_store %arg11[%34, %c0_18], %33 {strides = array<i32>} : memref<384x128xf32, #tpu.memory_space<vmem>>, vector<128x128xf32>,
    } else {
    }
    %c1_i32 = arith.constant 1 : i32
    %28 = arith.cmpi eq, %arg1, %c1_i32 : i32
    %29 = arith.extui %28 : i1 to i32
    %c0_i32_16 = arith.constant 0 : i32
    %30 = arith.cmpi ne, %29, %c0_i32_16 : i32
    scf.if %30 {
      %31 = arith.index_cast %1 : i32 to index
      %c0_17 = arith.constant 0 : index
      %32 = vector.load %arg11[%31, %c0_17] : memref<384x128xf32, #tpu.memory_space<vmem>>, vector<128x128xf32>
      %c0_18 = arith.constant 0 : index
      %c0_19 = arith.constant 0 : index
      %c0_20 = arith.constant 0 : index
      %33 = vector.load %arg7[%c0_18, %c0_19, %c0_20] : memref<1x1x128xf32, #tpu.memory_space<vmem>>, vector<1x1x128xf32>
      %34 = vector.shape_cast %33 : vector<1x1x128xf32> to vector<1x128xf32>
      %35 = vector.broadcast %34 : vector<1x128xf32> to vector<128x128xf32>
      %36 = arith.addf %32, %35 : vector<128x128xf32>
      %cst_21 = arith.constant 0.000000e+00 : f32
      %37 = vector.broadcast %cst_21 : f32 to vector<128x128xf32>
      %38 = arith.maximumf %36, %37 : vector<128x128xf32>
      %39 = arith.index_cast %1 : i32 to index
      %c0_22 = arith.constant 0 : index
      %40 = vector.load %arg9[%39, %c0_22] : memref<384x128xf32, #tpu.memory_space<vmem>>, vector<128x128xf32>
      tpu.vector_store %arg9[%39, %c0_22], %38 {strides = array<i32>} : memref<384x128xf32, #tpu.memory_space<vmem>>, vector<128x128xf32>,
      %c0_23 = arith.constant 0 : index
      %c0_24 = arith.constant 0 : index
      %41 = vector.load %arg8[%c0_23, %c0_24] : memref<128x128xf32, #tpu.memory_space<vmem>>, vector<128x128xf32>
      tpu.vector_store %arg8[%c0_23, %c0_24], %38 {strides = array<i32>} : memref<128x128xf32, #tpu.memory_space<vmem>>, vector<128x128xf32>,
    } else {
    }
    return
  }
  func.func @transform_0(%arg0: i32, %arg1: i32, %arg2: i32) -> (i32, i32) {
    %c0_i32 = arith.constant 0 : i32
    %c0_i32_0 = arith.constant 0 : i32
    %c0_i32_1 = arith.constant 0 : i32
    return %c0_i32, %c0_i32_0 : i32, i32
  }
  func.func @transform_1(%arg0: i32, %arg1: i32, %arg2: i32) -> (i32, i32, i32) {
    %c0_i32 = arith.constant 0 : i32
    %c0_i32_0 = arith.constant 0 : i32
    return %arg1, %arg2, %c0_i32 : i32, i32, i32
  }
  func.func @transform_2(%arg0: i32, %arg1: i32, %arg2: i32) -> (i32, i32, i32) {
    %c0_i32 = arith.constant 0 : i32
    %c0_i32_0 = arith.constant 0 : i32
    return %arg1, %arg2, %c0_i32 : i32, i32, i32
  }
  func.func @transform_3(%arg0: i32, %arg1: i32, %arg2: i32) -> (i32, i32, i32, i32) {
    %c0_i32 = arith.constant 0 : i32
    %c0_i32_0 = arith.constant 0 : i32
    %c0_i32_1 = arith.constant 0 : i32
    return %arg0, %arg1, %c0_i32, %c0_i32_0 : i32, i32, i32, i32
  }
  func.func @transform_4(%arg0: i32, %arg1: i32, %arg2: i32) -> (i32, i32, i32) {
    %c0_i32 = arith.constant 0 : i32
    %c0_i32_0 = arith.constant 0 : i32
    %c0_i32_1 = arith.constant 0 : i32
    return %arg0, %c0_i32, %c0_i32_0 : i32, i32, i32
  }
  func.func @transform_5(%arg0: i32, %arg1: i32, %arg2: i32) -> (i32, i32) {
    %c0_i32 = arith.constant 0 : i32
    %c0_i32_0 = arith.constant 0 : i32
    return %arg2, %c0_i32 : i32, i32
  }
}

</mosaic_0001>

<llo_original>
// kernel: tpu_custom_call.1
$region0: #{tpu_custom_call.1}
  #allocation0 [shape = 'u32[]', space=smem, size = 0x4, offset = 0x4, fixed_abs, tag = 'smem constant byte address 0x4 - core index']
  #allocation1 [shape = 'u32[144,128]{1,0:T(1,128)}', space=vmem, size = 0x12000, scoped, tag = 'internal scratch']
  #allocation2 [shape = 'f32[384,128]{1,0:T(8,128)}', space=vmem, size = 0x30000, scoped, tag = 'scratch operand']
  #allocation3 [shape = 'bf16[384,128]{1,0:T(8,128)(2,1)}', space=vmem, size = 0x18000, scoped, tag = 'scratch operand']
  #allocation4 [shape = 'f32[384,128]{1,0:T(8,128)}', space=vmem, size = 0x30000, scoped, tag = 'scratch operand']
  %s0 = inlined_call_operand.hbm [shape: f32[384,128], index: 0, kind: input, shape index: {}]
  %s1 = inlined_call_operand.vmem [shape: s8[2,384,384], index: 1, kind: input, shape index: {}]
  %s2 = inlined_call_operand.vmem [shape: f32[2,384,1], index: 2, kind: input, shape index: {}]
  %s3 = inlined_call_operand.hbm [shape: bf16[2,2,128,128], index: 3, kind: input, shape index: {}]
  %s4 = inlined_call_operand.vmem [shape: f32[2,1,128], index: 4, kind: input, shape index: {}]
  %s5 = inlined_call_operand.hbm [shape: f32[384,128], index: 5, kind: output, shape index: {}]
  %s6 = sld [smem:[#allocation0]]
  $region81: #{tpu_custom_call.1} parent=0
    _
  %s8 = ssub.s32 1, %s6
  %s9 = scalar_select 0, %s8, %s6
  $region1: #{tpu_custom_call.1} parent=0
    #allocation5 [shape = 'u8[196608]{0}', space=vmem, size = 0x30000, scoped, tag = 'input window, operand 0, single buffered']
    #allocation6 [shape = 's32[2]{0}', space=sflag, size = 0x8, scoped, tag = 'scoped memory for tpu_custom_call.1']
    #allocation7 [shape = 's32[2]{0}', space=sflag, size = 0x8, scoped, tag = 'scoped memory for tpu_custom_call.1']
    #allocation8 [shape = 'u8[65536]{0}', space=vmem, size = 0x10000, scoped, tag = 'input window, operand 3']
    #allocation9 [shape = 's32[2]{0}', space=sflag, size = 0x8, scoped, tag = 'scoped memory for tpu_custom_call.1']
    #allocation10 [shape = 'u8[131072]{0}', space=vmem, size = 0x20000, scoped, tag = 'output window, operand 0']
    %10 = vsyncpa [#allocation6], 0
    %11 = vsyncpa [#allocation9], 0
    %s12 = scalar_lea.sflag [#allocation9], 1
    %13 = vsyncpa %s12, 0
    %14 = vsyncpa [#allocation7], 0
    %s15 = scalar_lea.sflag [#allocation7], 1
    %16 = vsyncpa %s15, 0
    loop: start=0, step=1, limit=14
    $region2: #{tpu_custom_call.1} parent=1 // loop_pre_header
      _
    $region3: #{tpu_custom_call.1} parent=1 // loop_header
      %s18 = sphi 0, %s22
      %p19 = scmp.ge.s32.totalorder %s18, 14
      %s25 = sphi 0, %s44
      %s26 = sphi 0, %s40
      %s27 = sphi 0, %s36
      %s28 = sphi 0, %s25
      %s29 = sphi 0, %s26
      %s30 = sphi 0, %s27
      %s31 = sphi 0, %s28
      %s32 = sphi 0, %s29
      %s33 = sphi 0, %s30
      %s45 = sphi 0, %s45
      %s47 = sphi 0, %s45
      %s48 = sphi 0, %s47
      %s62 = sphi 0, %s48
      %s70 = sphi 0, %s72
      %s73 = sphi 0, %s70
      %s74 = sphi 0, %s73
      %s90 = sphi 0, %s74
      %s98 = sphi 0, %s100
      %s101 = sphi 0, %s98
      %s102 = sphi 0, %s101
      %s118 = sphi 0, %s102
      %s126 = sphi 0, %s128
      %s129 = sphi 0, %s126
      %s130 = sphi 0, %s129
      %s146 = sphi 0, %s130
      %s152 = sphi 0, %s154
      %s155 = sphi 0, %s152
      %s156 = sphi 0, %s155
      %s172 = sphi 0, %s156
      %s178 = sphi 0, %s180
      %s181 = sphi 0, %s178
      %s182 = sphi 0, %s181
      %s198 = sphi 0, %s182
    $region4: #{tpu_custom_call.1} parent=1 // loop_header_branch
      %21 = sbr.rel (%p19) target = $region8
    $region5: #{tpu_custom_call.1} parent=1 // loop_body
      %s23 = ssub.s32 %s18, 1
      %s24 = ssub.s32 %s18, 2
      %s34 = sadd.s32 1, %s27
      %p35 = scmp.ge.s32.totalorder %s34, 3
      %s36 = scalar_select %p35, 0, %s34
      %s37 = sadd.s32 1, %s26
      %s38 = scalar_select %p35, %s37, %s26
      %p39 = scmp.ge.s32.totalorder %s38, 2
      %s40 = scalar_select %p39, 0, %s38
      %s41 = sadd.s32 1, %s25
      %s42 = scalar_select %p39, %s41, %s25
      %p43 = scmp.ge.s32.totalorder %s42, 2
      %s44 = scalar_select %p43, 0, %s42
      %s46 = sadd.s32 %s45, 1
      %p49 = scmp.eq.s32.totalorder %s18, 11
      %p50 = scmp.ne.s32.totalorder %s45, %s47
      %p51 = scmp.eq.s32.totalorder %s18, 0
      %p52 = por %p50, %p51
      %p53 = scmp.ne.s32.totalorder %s45, %s47
      %p54 = scmp.eq.s32.totalorder %s23, 11
      %p55 = por %p53, %p54
      %p56 = scmp.ne.s32.totalorder %s47, %s48
      %p57 = scmp.eq.s32.totalorder %s23, 0
      %p58 = por %p56, %p57
      %p59 = scmp.ne.s32.totalorder %s47, %s48
      %p60 = scmp.eq.s32.totalorder %s24, 11
      %p61 = por %p59, %p60
      %p63 = scmp.ne.s32.totalorder %s48, %s62
      %p64 = scmp.eq.s32.totalorder %s24, 0
      %p65 = por %p63, %p64
      %s66 = ssub.s32 %s26, %s40
      %s67 = ssub.s32 %s27, %s36
      %s68 = sor.u32 %s66, %s67
      %p69 = scmp.eq.s32.totalorder %s68, 0
      %s71 = sadd.s32 %s70, 1
      %s72 = scalar_select %p69, %s70, %s71
      %p75 = pneg %p69
      %p76 = scmp.eq.s32.totalorder %s18, 11
      %p77 = por %p75, %p76
      %p78 = scmp.ne.s32.totalorder %s70, %s73
      %p79 = scmp.eq.s32.totalorder %s18, 0
      %p80 = por %p78, %p79
      %p81 = scmp.ne.s32.totalorder %s70, %s73
      %p82 = scmp.eq.s32.totalorder %s23, 11
      %p83 = por %p81, %p82
      %p84 = scmp.ne.s32.totalorder %s73, %s74
      %p85 = scmp.eq.s32.totalorder %s23, 0
      %p86 = por %p84, %p85
      %p87 = scmp.ne.s32.totalorder %s73, %s74
      %p88 = scmp.eq.s32.totalorder %s24, 11
      %p89 = por %p87, %p88
      %p91 = scmp.ne.s32.totalorder %s74, %s90
      %p92 = scmp.eq.s32.totalorder %s24, 0
      %p93 = por %p91, %p92
      %s94 = ssub.s32 %s26, %s40
      %s95 = ssub.s32 %s27, %s36
      %s96 = sor.u32 %s94, %s95
      %p97 = scmp.eq.s32.totalorder %s96, 0
      %s99 = sadd.s32 %s98, 1
      %s100 = scalar_select %p97, %s98, %s99
      %p103 = pneg %p97
      %p104 = scmp.eq.s32.totalorder %s18, 11
      %p105 = por %p103, %p104
      %p106 = scmp.ne.s32.totalorder %s98, %s101
      %p107 = scmp.eq.s32.totalorder %s18, 0
      %p108 = por %p106, %p107
      %p109 = scmp.ne.s32.totalorder %s98, %s101
      %p110 = scmp.eq.s32.totalorder %s23, 11
      %p111 = por %p109, %p110
      %p112 = scmp.ne.s32.totalorder %s101, %s102
      %p113 = scmp.eq.s32.totalorder %s23, 0
      %p114 = por %p112, %p113
      %p115 = scmp.ne.s32.totalorder %s101, %s102
      %p116 = scmp.eq.s32.totalorder %s24, 11
      %p117 = por %p115, %p116
      %p119 = scmp.ne.s32.totalorder %s102, %s118
      %p120 = scmp.eq.s32.totalorder %s24, 0
      %p121 = por %p119, %p120
      %s122 = ssub.s32 %s25, %s44
      %s123 = ssub.s32 %s26, %s40
      %s124 = sor.u32 %s122, %s123
      %p125 = scmp.eq.s32.totalorder %s124, 0
      %s127 = sadd.s32 %s126, 1
      %s128 = scalar_select %p125, %s126, %s127
      %p131 = pneg %p125
      %p132 = scmp.eq.s32.totalorder %s18, 11
      %p133 = por %p131, %p132
      %p134 = scmp.ne.s32.totalorder %s126, %s129
      %p135 = scmp.eq.s32.totalorder %s18, 0
      %p136 = por %p134, %p135
      %p137 = scmp.ne.s32.totalorder %s126, %s129
      %p138 = scmp.eq.s32.totalorder %s23, 11
      %p139 = por %p137, %p138
      %p140 = scmp.ne.s32.totalorder %s129, %s130
      %p141 = scmp.eq.s32.totalorder %s23, 0
      %p142 = por %p140, %p141
      %p143 = scmp.ne.s32.totalorder %s129, %s130
      %p144 = scmp.eq.s32.totalorder %s24, 11
      %p145 = por %p143, %p144
      %p147 = scmp.ne.s32.totalorder %s130, %s146
      %p148 = scmp.eq.s32.totalorder %s24, 0
      %p149 = por %p147, %p148
      %s150 = ssub.s32 %s25, %s44
      %p151 = scmp.eq.s32.totalorder %s150, 0
      %s153 = sadd.s32 %s152, 1
      %s154 = scalar_select %p151, %s152, %s153
      %p157 = pneg %p151
      %p158 = scmp.eq.s32.totalorder %s18, 11
      %p159 = por %p157, %p158
      %p160 = scmp.ne.s32.totalorder %s152, %s155
      %p161 = scmp.eq.s32.totalorder %s18, 0
      %p162 = por %p160, %p161
      %p163 = scmp.ne.s32.totalorder %s152, %s155
      %p164 = scmp.eq.s32.totalorder %s23, 11
      %p165 = por %p163, %p164
      %p166 = scmp.ne.s32.totalorder %s155, %s156
      %p167 = scmp.eq.s32.totalorder %s23, 0
      %p168 = por %p166, %p167
      %p169 = scmp.ne.s32.totalorder %s155, %s156
      %p170 = scmp.eq.s32.totalorder %s24, 11
      %p171 = por %p169, %p170
      %p173 = scmp.ne.s32.totalorder %s156, %s172
      %p174 = scmp.eq.s32.totalorder %s24, 0
      %p175 = por %p173, %p174
      %s176 = ssub.s32 %s27, %s36
      %p177 = scmp.eq.s32.totalorder %s176, 0
      %s179 = sadd.s32 %s178, 1
      %s180 = scalar_select %p177, %s178, %s179
      %p183 = pneg %p177
      %p184 = scmp.eq.s32.totalorder %s18, 11
      %p185 = por %p183, %p184
      %p186 = scmp.ne.s32.totalorder %s178, %s181
      %p187 = scmp.eq.s32.totalorder %s18, 0
      %p188 = por %p186, %p187
      %p189 = scmp.ne.s32.totalorder %s178, %s181
      %p190 = scmp.eq.s32.totalorder %s23, 11
      %p191 = por %p189, %p190
      %p192 = scmp.ne.s32.totalorder %s181, %s182
      %p193 = scmp.eq.s32.totalorder %s23, 0
      %p194 = por %p192, %p193
      %p195 = scmp.ne.s32.totalorder %s181, %s182
      %p196 = scmp.eq.s32.totalorder %s24, 11
      %p197 = por %p195, %p196
      %p199 = scmp.ne.s32.totalorder %s182, %s198
      %p200 = scmp.eq.s32.totalorder %s24, 0
      %p201 = por %p199, %p200
      %p202 = scmp.le.s32.totalorder 1, %s18
      %p203 = scmp.lt.s32.totalorder %s18, 13
      %p204 = pnand %p202, %p203
      %p205 = pneg %p204
      // Predicated region
      $region9: #{tpu_custom_call.1} parent=5 // pred_check
        _
      $region10: #{tpu_custom_call.1} parent=5 // pred_check_branch
        %207 = sbr.rel (%p204) target = $region12
      $region11: #{tpu_custom_call.1} parent=5 // pred_region
        %s208 = ssub.s32 %s18, 1
        // Predicated region
        $region13: #{tpu_custom_call.1} parent=11 // pred_check
          %p209 = pneg %p58
        $region14: #{tpu_custom_call.1} parent=11 // pred_check_branch
          %211 = sbr.rel (%p209) target = $region16
        $region15: #{tpu_custom_call.1} parent=11 // pred_region
          %s213 = ssub.s32 6144, 6144
          %214 = vsyncadd [#allocation6], %s213
          %s215 = sshll.u32 [#allocation5], 4
          %s216 = int_to_ptr.vmem [resolvable:$true] %s215
          %221 = dma.hbm_to_vmem [thread:$0]  %s0, 6144, %s216, [#allocation6], 128, 128, 8
        $region16: #{tpu_custom_call.1} parent=11 // pred_fallthru
          _
      $region12: #{tpu_custom_call.1} parent=5 // pred_fallthru
        _
      %p222 = scmp.lt.s32.totalorder %s18, 12
      // Predicated region
      $region17: #{tpu_custom_call.1} parent=5 // pred_check
        %p223 = pneg %p222
      $region18: #{tpu_custom_call.1} parent=5 // pred_check_branch
        %225 = sbr.rel (%p223) target = $region20
      $region19: #{tpu_custom_call.1} parent=5 // pred_region
        // Predicated region
        $region21: #{tpu_custom_call.1} parent=19 // pred_check
          %p226 = pneg %p80
        $region22: #{tpu_custom_call.1} parent=19 // pred_check_branch
          %228 = sbr.rel (%p226) target = $region24
        $region23: #{tpu_custom_call.1} parent=19 // pred_region
          %s229 = smul.u32 4, %s27
          %p230 = scmp.lt.s32.totalorder %s26, 1
          %s231 = scalar_select %p230, %s26, 1
          %p232 = scmp.lt.s32.totalorder %s229, 11
          %s233 = scalar_select %p232, %s229, 11
          %s234 = smul.addr %s233, 3
          %s235 = smul.addr %s231, 36
          %s236 = sadd.s32 %s234, %s235
          %s237 = smul.addr %s236, 8
          %s238 = scalar_lea.vmem %s1, %s237
          %s239 = smul.u32 4, %s27
        $region24: #{tpu_custom_call.1} parent=19 // pred_fallthru
          _
        // Predicated region
        $region25: #{tpu_custom_call.1} parent=19 // pred_check
          %p240 = pneg %p108
        $region26: #{tpu_custom_call.1} parent=19 // pred_check_branch
          %242 = sbr.rel (%p240) target = $region28
        $region27: #{tpu_custom_call.1} parent=19 // pred_region
          %s243 = smul.u32 16, %s27
          %p244 = scmp.lt.s32.totalorder %s26, 1
          %s245 = scalar_select %p244, %s26, 1
          %p246 = scmp.lt.s32.totalorder %s243, 47
          %s247 = scalar_select %p246, %s243, 47
          %s248 = smul.addr %s245, 48
          %s249 = sadd.s32 %s247, %s248
          %s250 = smul.addr %s249, 8
          %s251 = scalar_lea.vmem %s2, %s250
          %s252 = smul.u32 16, %s27
        $region28: #{tpu_custom_call.1} parent=19 // pred_fallthru
          _
        // Predicated region
        $region29: #{tpu_custom_call.1} parent=19 // pred_check
          %p253 = pneg %p136
        $region30: #{tpu_custom_call.1} parent=19 // pred_check_branch
          %255 = sbr.rel (%p253) target = $region32
        $region31: #{tpu_custom_call.1} parent=19 // pred_region
          %s256 = sand.u32 %s126, 1
          %s257 = scalar_lea.sflag [#allocation9], %s256
          %s258 = sand.u32 %s126, 1
          %s259 = smul.addr %s258, 64
          %s260 = scalar_lea.vmem [#allocation8], %s259
          %s262 = ssub.s32 1024, 1024
          %263 = vsyncadd %s257, %s262
          %s264 = smul.addr %s26, 16
          %s265 = smul.addr %s25, 32
          %s266 = sadd.s32 %s264, %s265
          %s267 = smul.addr %s266, 64
          %s268 = scalar_lea.hbm %s3, %s267
          %s269 = sshll.u32 %s260, 4
          %s270 = int_to_ptr.vmem [resolvable:$true] %s269
          %275 = dma.hbm_to_vmem [thread:$0]  %s268, 1024, %s270, %s257, 64, 64, 4
        $region32: #{tpu_custom_call.1} parent=19 // pred_fallthru
          _
        // Predicated region
        $region33: #{tpu_custom_call.1} parent=19 // pred_check
          %p276 = pneg %p162
        $region34: #{tpu_custom_call.1} parent=19 // pred_check_branch
          %278 = sbr.rel (%p276) target = $region36
        $region35: #{tpu_custom_call.1} parent=19 // pred_region
          %p279 = scmp.lt.s32.totalorder %s25, 1
          %s280 = scalar_select %p279, %s25, 1
          %s281 = scalar_lea.vmem %s4, %s280
        $region36: #{tpu_custom_call.1} parent=19 // pred_fallthru
          _
      $region20: #{tpu_custom_call.1} parent=5 // pred_fallthru
        _
      %p282 = scmp.le.s32.totalorder 1, %s18
      %p283 = scmp.lt.s32.totalorder %s18, 13
      %p284 = pnand %p282, %p283
      %p285 = pneg %p284
      // Predicated region
      $region37: #{tpu_custom_call.1} parent=5 // pred_check
        _
      $region38: #{tpu_custom_call.1} parent=5 // pred_check_branch
        %287 = sbr.rel (%p284) target = $region40
      $region39: #{tpu_custom_call.1} parent=5 // pred_region
        %s288 = ssub.s32 %s18, 1
        // Predicated region
        $region41: #{tpu_custom_call.1} parent=39 // pred_check
          %p289 = pneg %p58
        $region42: #{tpu_custom_call.1} parent=39 // pred_check_branch
          %291 = sbr.rel (%p289) target = $region44
        $region43: #{tpu_custom_call.1} parent=39 // pred_region
          %292 = dma.done [#allocation6], 6144
        $region44: #{tpu_custom_call.1} parent=39 // pred_fallthru
          _
        %s293 = sand.u32 %s129, 1
        %s294 = scalar_lea.sflag [#allocation9], %s293
        %s295 = sand.u32 %s129, 1
        %s296 = smul.addr %s295, 64
        %s297 = scalar_lea.vmem [#allocation8], %s296
        // Predicated region
        $region45: #{tpu_custom_call.1} parent=39 // pred_check
          %p298 = pneg %p142
        $region46: #{tpu_custom_call.1} parent=39 // pred_check_branch
          %300 = sbr.rel (%p298) target = $region48
        $region47: #{tpu_custom_call.1} parent=39 // pred_region
          %301 = dma.done %s294, 1024
        $region48: #{tpu_custom_call.1} parent=39 // pred_fallthru
          _
        %p302 = pneg %p58
        %p303 = pneg %p55
        %s304 = smul.u32 4, %s30
        %p305 = scmp.lt.s32.totalorder %s29, 1
        %s306 = scalar_select %p305, %s29, 1
        %p307 = scmp.lt.s32.totalorder %s304, 11
        %s308 = scalar_select %p307, %s304, 11
        %s309 = smul.addr %s308, 3
        %s310 = smul.addr %s306, 36
        %s311 = sadd.s32 %s309, %s310
        %s312 = smul.addr %s311, 8
        %s313 = scalar_lea.vmem %s1, %s312
        %p314 = pneg %p86
        %p315 = pneg %p83
        %s316 = smul.u32 16, %s30
        %p317 = scmp.lt.s32.totalorder %s29, 1
        %s318 = scalar_select %p317, %s29, 1
        %p319 = scmp.lt.s32.totalorder %s316, 47
        %s320 = scalar_select %p319, %s316, 47
        %s321 = smul.addr %s318, 48
        %s322 = sadd.s32 %s320, %s321
        %s323 = smul.addr %s322, 8
        %s324 = scalar_lea.vmem %s2, %s323
        %p325 = pneg %p114
        %p326 = pneg %p111
        %s327 = sand.u32 %s129, 1
        %s328 = scalar_lea.sflag [#allocation9], %s327
        %s329 = sand.u32 %s129, 1
        %s330 = smul.addr %s329, 64
        %s331 = scalar_lea.vmem [#allocation8], %s330
        %p332 = pneg %p142
        %p333 = pneg %p139
        %p334 = scmp.lt.s32.totalorder %s28, 1
        %s335 = scalar_select %p334, %s28, 1
        %s336 = scalar_lea.vmem %s4, %s335
        %p337 = pneg %p168
        %p338 = pneg %p165
        %p339 = pneg %p194
        %p340 = pneg %p191
        %s341 = sand.u32 %s181, 1
        %s342 = scalar_lea.sflag [#allocation7], %s341
        %s343 = sand.u32 %s181, 1
        %s344 = smul.addr %s343, 128
        %s345 = scalar_lea.vmem [#allocation10], %s344
        %s346 = smul.u32 4, %s30
        %p347 = scmp.lt.s32.totalorder %s29, 1
        %s348 = scalar_select %p347, %s29, 1
        %p349 = scmp.lt.s32.totalorder %s346, 11
        %s350 = scalar_select %p349, %s346, 11
        %s351 = smul.addr %s350, 3
        %s352 = smul.addr %s348, 36
        %s353 = sadd.s32 %s351, %s352
        %s354 = smul.addr %s353, 8
        %s355 = scalar_lea.vmem %s1, %s354
        %s356 = smul.u32 4, %s30
        %s357 = smul.u32 16, %s30
        %p358 = scmp.lt.s32.totalorder %s29, 1
        %s359 = scalar_select %p358, %s29, 1
        %p360 = scmp.lt.s32.totalorder %s357, 47
        %s361 = scalar_select %p360, %s357, 47
        %s362 = smul.addr %s359, 48
        %s363 = sadd.s32 %s361, %s362
        %s364 = smul.addr %s363, 8
        %s365 = scalar_lea.vmem %s2, %s364
        %s366 = smul.u32 16, %s30
        %p367 = scmp.lt.s32.totalorder %s28, 1
        %s368 = scalar_select %p367, %s28, 1
        %s369 = scalar_lea.vmem %s4, %s368
        %s370 = smul.u32 16, %s30
        %s372 = smul.u32 %s30, 128
        %p373 = scmp.eq.s32.totalorder %s28, 0
        %p374 = scmp.eq.s32.totalorder %s29, 0
        %p375 = pnand %p373, %p374
        %p376 = pneg %p375
        %p377 = scmp.eq.s32.totalorder %s30, 0
        %p378 = pnand %p376, %p377
        %p379 = pneg %p378
        // Predicated region
        $region49: #{tpu_custom_call.1} parent=39 // pred_check
          _
        $region50: #{tpu_custom_call.1} parent=39 // pred_check_branch
          %381 = sbr.rel (%p378) target = $region52
        $region51: #{tpu_custom_call.1} parent=39 // pred_region
          %v382 = vld [vmem:[#allocation5] sm:$0xff]
          %v383 = vld [vmem:[#allocation5 + $0x8] sm:$0xff]
          %v384 = vld [vmem:[#allocation5 + $0x10] sm:$0xff]
          %v385 = vld [vmem:[#allocation5 + $0x18] sm:$0xff]
          %v386 = vld [vmem:[#allocation5 + $0x20] sm:$0xff]
          %v387 = vld [vmem:[#allocation5 + $0x28] sm:$0xff]
          %v388 = vld [vmem:[#allocation5 + $0x30] sm:$0xff]
          %v389 = vld [vmem:[#allocation5 + $0x38] sm:$0xff]
          %v390 = vld [vmem:[#allocation5 + $0x40] sm:$0xff]
          %v391 = vld [vmem:[#allocation5 + $0x48] sm:$0xff]
          %v392 = vld [vmem:[#allocation5 + $0x50] sm:$0xff]
          %v393 = vld [vmem:[#allocation5 + $0x58] sm:$0xff]
          %v394 = vld [vmem:[#allocation5 + $0x60] sm:$0xff]
          %v395 = vld [vmem:[#allocation5 + $0x68] sm:$0xff]
          %v396 = vld [vmem:[#allocation5 + $0x70] sm:$0xff]
          %v397 = vld [vmem:[#allocation5 + $0x78] sm:$0xff]
          %v398 = vld [vmem:[#allocation5 + $0x80] sm:$0xff]
          %v399 = vld [vmem:[#allocation5 + $0x88] sm:$0xff]
          %v400 = vld [vmem:[#allocation5 + $0x90] sm:$0xff]
          %v401 = vld [vmem:[#allocation5 + $0x98] sm:$0xff]
          %v402 = vld [vmem:[#allocation5 + $0xa0] sm:$0xff]
          %v403 = vld [vmem:[#allocation5 + $0xa8] sm:$0xff]
          %v404 = vld [vmem:[#allocation5 + $0xb0] sm:$0xff]
          %v405 = vld [vmem:[#allocation5 + $0xb8] sm:$0xff]
          %v406 = vld [vmem:[#allocation5 + $0xc0] sm:$0xff]
          %v407 = vld [vmem:[#allocation5 + $0xc8] sm:$0xff]
          %v408 = vld [vmem:[#allocation5 + $0xd0] sm:$0xff]
          %v409 = vld [vmem:[#allocation5 + $0xd8] sm:$0xff]
          %v410 = vld [vmem:[#allocation5 + $0xe0] sm:$0xff]
          %v411 = vld [vmem:[#allocation5 + $0xe8] sm:$0xff]
          %v412 = vld [vmem:[#allocation5 + $0xf0] sm:$0xff]
          %v413 = vld [vmem:[#allocation5 + $0xf8] sm:$0xff]
          %v414 = vld [vmem:[#allocation5 + $0x100] sm:$0xff]
          %v415 = vld [vmem:[#allocation5 + $0x108] sm:$0xff]
          %v416 = vld [vmem:[#allocation5 + $0x110] sm:$0xff]
          %v417 = vld [vmem:[#allocation5 + $0x118] sm:$0xff]
          %v418 = vld [vmem:[#allocation5 + $0x120] sm:$0xff]
          %v419 = vld [vmem:[#allocation5 + $0x128] sm:$0xff]
          %v420 = vld [vmem:[#allocation5 + $0x130] sm:$0xff]
          %v421 = vld [vmem:[#allocation5 + $0x138] sm:$0xff]
          %v422 = vld [vmem:[#allocation5 + $0x140] sm:$0xff]
          %v423 = vld [vmem:[#allocation5 + $0x148] sm:$0xff]
          %v424 = vld [vmem:[#allocation5 + $0x150] sm:$0xff]
          %v425 = vld [vmem:[#allocation5 + $0x158] sm:$0xff]
          %v426 = vld [vmem:[#allocation5 + $0x160] sm:$0xff]
          %v427 = vld [vmem:[#allocation5 + $0x168] sm:$0xff]
          %v428 = vld [vmem:[#allocation5 + $0x170] sm:$0xff]
          %v429 = vld [vmem:[#allocation5 + $0x178] sm:$0xff]
          %430 = vst [vmem:[#allocation2] sm:$0xff] %v382
          %431 = vst [vmem:[#allocation2 + $0x8] sm:$0xff] %v383
          %432 = vst [vmem:[#allocation2 + $0x10] sm:$0xff] %v384
          %433 = vst [vmem:[#allocation2 + $0x18] sm:$0xff] %v385
          %434 = vst [vmem:[#allocation2 + $0x20] sm:$0xff] %v386
          %435 = vst [vmem:[#allocation2 + $0x28] sm:$0xff] %v387
          %436 = vst [vmem:[#allocation2 + $0x30] sm:$0xff] %v388
          %437 = vst [vmem:[#allocation2 + $0x38] sm:$0xff] %v389
          %438 = vst [vmem:[#allocation2 + $0x40] sm:$0xff] %v390
          %439 = vst [vmem:[#allocation2 + $0x48] sm:$0xff] %v391
          %440 = vst [vmem:[#allocation2 + $0x50] sm:$0xff] %v392
          %441 = vst [vmem:[#allocation2 + $0x58] sm:$0xff] %v393
          %442 = vst [vmem:[#allocation2 + $0x60] sm:$0xff] %v394
          %443 = vst [vmem:[#allocation2 + $0x68] sm:$0xff] %v395
          %444 = vst [vmem:[#allocation2 + $0x70] sm:$0xff] %v396
          %445 = vst [vmem:[#allocation2 + $0x78] sm:$0xff] %v397
          %446 = vst [vmem:[#allocation2 + $0x80] sm:$0xff] %v398
          %447 = vst [vmem:[#allocation2 + $0x88] sm:$0xff] %v399
          %448 = vst [vmem:[#allocation2 + $0x90] sm:$0xff] %v400
          %449 = vst [vmem:[#allocation2 + $0x98] sm:$0xff] %v401
          %450 = vst [vmem:[#allocation2 + $0xa0] sm:$0xff] %v402
          %451 = vst [vmem:[#allocation2 + $0xa8] sm:$0xff] %v403
          %452 = vst [vmem:[#allocation2 + $0xb0] sm:$0xff] %v404
          %453 = vst [vmem:[#allocation2 + $0xb8] sm:$0xff] %v405
          %454 = vst [vmem:[#allocation2 + $0xc0] sm:$0xff] %v406
          %455 = vst [vmem:[#allocation2 + $0xc8] sm:$0xff] %v407
          %456 = vst [vmem:[#allocation2 + $0xd0] sm:$0xff] %v408
          %457 = vst [vmem:[#allocation2 + $0xd8] sm:$0xff] %v409
          %458 = vst [vmem:[#allocation2 + $0xe0] sm:$0xff] %v410
          %459 = vst [vmem:[#allocation2 + $0xe8] sm:$0xff] %v411
          %460 = vst [vmem:[#allocation2 + $0xf0] sm:$0xff] %v412
          %461 = vst [vmem:[#allocation2 + $0xf8] sm:$0xff] %v413
          %462 = vst [vmem:[#allocation2 + $0x100] sm:$0xff] %v414
          %463 = vst [vmem:[#allocation2 + $0x108] sm:$0xff] %v415
          %464 = vst [vmem:[#allocation2 + $0x110] sm:$0xff] %v416
          %465 = vst [vmem:[#allocation2 + $0x118] sm:$0xff] %v417
          %466 = vst [vmem:[#allocation2 + $0x120] sm:$0xff] %v418
          %467 = vst [vmem:[#allocation2 + $0x128] sm:$0xff] %v419
          %468 = vst [vmem:[#allocation2 + $0x130] sm:$0xff] %v420
          %469 = vst [vmem:[#allocation2 + $0x138] sm:$0xff] %v421
          %470 = vst [vmem:[#allocation2 + $0x140] sm:$0xff] %v422
          %471 = vst [vmem:[#allocation2 + $0x148] sm:$0xff] %v423
          %472 = vst [vmem:[#allocation2 + $0x150] sm:$0xff] %v424
          %473 = vst [vmem:[#allocation2 + $0x158] sm:$0xff] %v425
          %474 = vst [vmem:[#allocation2 + $0x160] sm:$0xff] %v426
          %475 = vst [vmem:[#allocation2 + $0x168] sm:$0xff] %v427
          %476 = vst [vmem:[#allocation2 + $0x170] sm:$0xff] %v428
          %477 = vst [vmem:[#allocation2 + $0x178] sm:$0xff] %v429
        $region52: #{tpu_custom_call.1} parent=39 // pred_fallthru
          _
        // Predicated region
        $region53: #{tpu_custom_call.1} parent=39 // pred_check
          %p478 = pneg %p377
        $region54: #{tpu_custom_call.1} parent=39 // pred_check_branch
          %480 = sbr.rel (%p478) target = $region56
        $region55: #{tpu_custom_call.1} parent=39 // pred_region
          %v481 = vld [vmem:[#allocation2] sm:$0xff]
          %v482 = vld [vmem:[#allocation2 + $0x8] sm:$0xff]
          %v483 = vld [vmem:[#allocation2 + $0x10] sm:$0xff]
          %v484 = vld [vmem:[#allocation2 + $0x18] sm:$0xff]
          %v485 = vld [vmem:[#allocation2 + $0x20] sm:$0xff]
          %v486 = vld [vmem:[#allocation2 + $0x28] sm:$0xff]
          %v487 = vld [vmem:[#allocation2 + $0x30] sm:$0xff]
          %v488 = vld [vmem:[#allocation2 + $0x38] sm:$0xff]
          %v489 = vld [vmem:[#allocation2 + $0x40] sm:$0xff]
          %v490 = vld [vmem:[#allocation2 + $0x48] sm:$0xff]
          %v491 = vld [vmem:[#allocation2 + $0x50] sm:$0xff]
          %v492 = vld [vmem:[#allocation2 + $0x58] sm:$0xff]
          %v493 = vld [vmem:[#allocation2 + $0x60] sm:$0xff]
          %v494 = vld [vmem:[#allocation2 + $0x68] sm:$0xff]
          %v495 = vld [vmem:[#allocation2 + $0x70] sm:$0xff]
          %v496 = vld [vmem:[#allocation2 + $0x78] sm:$0xff]
          %v497 = vld [vmem:[#allocation2 + $0x80] sm:$0xff]
          %v498 = vld [vmem:[#allocation2 + $0x88] sm:$0xff]
          %v499 = vld [vmem:[#allocation2 + $0x90] sm:$0xff]
          %v500 = vld [vmem:[#allocation2 + $0x98] sm:$0xff]
          %v501 = vld [vmem:[#allocation2 + $0xa0] sm:$0xff]
          %v502 = vld [vmem:[#allocation2 + $0xa8] sm:$0xff]
          %v503 = vld [vmem:[#allocation2 + $0xb0] sm:$0xff]
          %v504 = vld [vmem:[#allocation2 + $0xb8] sm:$0xff]
          %v505 = vld [vmem:[#allocation2 + $0xc0] sm:$0xff]
          %v506 = vld [vmem:[#allocation2 + $0xc8] sm:$0xff]
          %v507 = vld [vmem:[#allocation2 + $0xd0] sm:$0xff]
          %v508 = vld [vmem:[#allocation2 + $0xd8] sm:$0xff]
          %v509 = vld [vmem:[#allocation2 + $0xe0] sm:$0xff]
          %v510 = vld [vmem:[#allocation2 + $0xe8] sm:$0xff]
          %v511 = vld [vmem:[#allocation2 + $0xf0] sm:$0xff]
          %v512 = vld [vmem:[#allocation2 + $0xf8] sm:$0xff]
          %v513 = vld [vmem:[#allocation2 + $0x100] sm:$0xff]
          %v514 = vld [vmem:[#allocation2 + $0x108] sm:$0xff]
          %v515 = vld [vmem:[#allocation2 + $0x110] sm:$0xff]
          %v516 = vld [vmem:[#allocation2 + $0x118] sm:$0xff]
          %v517 = vld [vmem:[#allocation2 + $0x120] sm:$0xff]
          %v518 = vld [vmem:[#allocation2 + $0x128] sm:$0xff]
          %v519 = vld [vmem:[#allocation2 + $0x130] sm:$0xff]
          %v520 = vld [vmem:[#allocation2 + $0x138] sm:$0xff]
          %v521 = vld [vmem:[#allocation2 + $0x140] sm:$0xff]
          %v522 = vld [vmem:[#allocation2 + $0x148] sm:$0xff]
          %v523 = vld [vmem:[#allocation2 + $0x150] sm:$0xff]
          %v524 = vld [vmem:[#allocation2 + $0x158] sm:$0xff]
          %v525 = vld [vmem:[#allocation2 + $0x160] sm:$0xff]
          %v526 = vld [vmem:[#allocation2 + $0x168] sm:$0xff]
          %v527 = vld [vmem:[#allocation2 + $0x170] sm:$0xff]
          %v528 = vld [vmem:[#allocation2 + $0x178] sm:$0xff]
          %v529 = vpack.c.bf16 %v482, %v481
          %v530 = vpack.c.bf16 %v484, %v483
          %v531 = vpack.c.bf16 %v486, %v485
          %v532 = vpack.c.bf16 %v488, %v487
          %v533 = vpack.c.bf16 %v490, %v489
          %v534 = vpack.c.bf16 %v492, %v491
          %v535 = vpack.c.bf16 %v494, %v493
          %v536 = vpack.c.bf16 %v496, %v495
          %v537 = vpack.c.bf16 %v498, %v497
          %v538 = vpack.c.bf16 %v500, %v499
          %v539 = vpack.c.bf16 %v502, %v501
          %v540 = vpack.c.bf16 %v504, %v503
          %v541 = vpack.c.bf16 %v506, %v505
          %v542 = vpack.c.bf16 %v508, %v507
          %v543 = vpack.c.bf16 %v510, %v509
          %v544 = vpack.c.bf16 %v512, %v511
          %v545 = vpack.c.bf16 %v514, %v513
          %v546 = vpack.c.bf16 %v516, %v515
          %v547 = vpack.c.bf16 %v518, %v517
          %v548 = vpack.c.bf16 %v520, %v519
          %v549 = vpack.c.bf16 %v522, %v521
          %v550 = vpack.c.bf16 %v524, %v523
          %v551 = vpack.c.bf16 %v526, %v525
          %v552 = vpack.c.bf16 %v528, %v527
          %v553 = vld [vmem:[%s297] sm:$0xf]
          %v554 = vld [vmem:[%s297 + $0x4] sm:$0xf]
          %v555 = vld [vmem:[%s297 + $0x8] sm:$0xf]
          %v556 = vld [vmem:[%s297 + $0xc] sm:$0xf]
          %v557 = vld [vmem:[%s297 + $0x10] sm:$0xf]
          %v558 = vld [vmem:[%s297 + $0x14] sm:$0xf]
          %v559 = vld [vmem:[%s297 + $0x18] sm:$0xf]
          %v560 = vld [vmem:[%s297 + $0x1c] sm:$0xf]
          %v561 = vld [vmem:[%s297 + $0x20] sm:$0xf]
          %v562 = vld [vmem:[%s297 + $0x24] sm:$0xf]
          %v563 = vld [vmem:[%s297 + $0x28] sm:$0xf]
          %v564 = vld [vmem:[%s297 + $0x2c] sm:$0xf]
          %v565 = vld [vmem:[%s297 + $0x30] sm:$0xf]
          %v566 = vld [vmem:[%s297 + $0x34] sm:$0xf]
          %v567 = vld [vmem:[%s297 + $0x38] sm:$0xf]
          %v568 = vld [vmem:[%s297 + $0x3c] sm:$0xf]
          %v585 = vunpack.c.l.b16 %v553
          %v586 = vunpack.c.l.b16 %v554
          %v587 = vunpack.c.l.b16 %v555
          %v588 = vunpack.c.l.b16 %v556
          %v589 = vunpack.c.l.b16 %v557
          %v590 = vunpack.c.l.b16 %v558
          %v591 = vunpack.c.l.b16 %v559
          %v592 = vunpack.c.l.b16 %v560
          %v593 = vunpack.c.l.b16 %v561
          %v594 = vunpack.c.l.b16 %v562
          %v595 = vunpack.c.l.b16 %v563
          %v596 = vunpack.c.l.b16 %v564
          %v597 = vunpack.c.l.b16 %v565
          %v598 = vunpack.c.l.b16 %v566
          %v599 = vunpack.c.l.b16 %v567
          %v600 = vunpack.c.l.b16 %v568
          %v601 = vpack.c.b16 %v586, %v585
          %v602 = vpack.c.b16 %v588, %v587
          %v603 = vpack.c.b16 %v590, %v589
          %v604 = vpack.c.b16 %v592, %v591
          %v605 = vpack.c.b16 %v594, %v593
          %v606 = vpack.c.b16 %v596, %v595
          %v607 = vpack.c.b16 %v598, %v597
          %v608 = vpack.c.b16 %v600, %v599
          %617 = vmatprep.subr.bf16.mxu0 0
          %618 = vmatpush1.bf16.msra.mxu0 %v608
          %619 = vmatprep.subr.bf16.mxu0 0
          %620 = vmatpush1.bf16.msra.mxu0 %v607
          %621 = vmatprep.subr.bf16.mxu0 0
          %622 = vmatpush1.bf16.msra.mxu0 %v606
          %623 = vmatprep.subr.bf16.mxu0 0
          %624 = vmatpush1.bf16.msra.mxu0 %v605
          %625 = vmatprep.subr.bf16.mxu0 0
          %626 = vmatpush1.bf16.msra.mxu0 %v604
          %627 = vmatprep.subr.bf16.mxu0 0
          %628 = vmatpush1.bf16.msra.mxu0 %v603
          %629 = vmatprep.subr.bf16.mxu0 0
          %630 = vmatpush1.bf16.msra.mxu0 %v602
          %631 = vmatprep.subr.bf16.mxu0 0
          %632 = vmatpush1.bf16.msra.mxu0 %v601
          %633 = vmatprep.subr.bf16.mxu0 0
          %634 = vmatpush2.bf16.msra.mxu0 0
          %635 = vmatprep.subr.bf16.mxu0 0
          %636 = vmatpush2.bf16.msra.mxu0 0
          %637 = vmatprep.subr.bf16.mxu0 0
          %638 = vmatpush2.bf16.msra.mxu0 0
          %639 = vmatprep.subr.bf16.mxu0 0
          %640 = vmatpush2.bf16.msra.mxu0 0
          %641 = vmatprep.subr.bf16.mxu0 0
          %642 = vmatpush2.bf16.msra.mxu0 0
          %643 = vmatprep.subr.bf16.mxu0 0
          %644 = vmatpush2.bf16.msra.mxu0 0
          %645 = vmatprep.subr.bf16.mxu0 0
          %646 = vmatpush2.bf16.msra.mxu0 0
          %647 = vmatprep.subr.bf16.mxu0 0
          %648 = vmatpush2.bf16.msra.mxu0 0
          %649 = vmatprep.mubr.bf16.mxu0 0
          %650 = vmatmul.mubr.bf16.gmra.mxu0 %v529
          %v651 = vpop.f32.mrf.mxu0
          %v652 = vadd.f32 0.0, %v651
          %v653 = vpop.f32.mrf.mxu0
          %v654 = vpop.f32.mrf.mxu0
          %v655 = vadd.f32 0.0, %v654
          %v656 = vpop.f32.mrf.mxu0
          %657 = vmatprep.mubr.bf16.mxu0 0
          %658 = vmatmul.mubr.bf16.gmra.mxu0 %v530
          %v659 = vpop.f32.mrf.mxu0
          %v660 = vadd.f32 0.0, %v659
          %v661 = vpop.f32.mrf.mxu0
          %v662 = vpop.f32.mrf.mxu0
          %v663 = vadd.f32 0.0, %v662
          %v664 = vpop.f32.mrf.mxu0
          %665 = vmatprep.mubr.bf16.mxu0 0
          %666 = vmatmul.mubr.bf16.gmra.mxu0 %v531
          %v667 = vpop.f32.mrf.mxu0
          %v668 = vadd.f32 0.0, %v667
          %v669 = vpop.f32.mrf.mxu0
          %v670 = vpop.f32.mrf.mxu0
          %v671 = vadd.f32 0.0, %v670
          %v672 = vpop.f32.mrf.mxu0
          %673 = vmatprep.mubr.bf16.mxu0 0
          %674 = vmatmul.mubr.bf16.gmra.mxu0 %v532
          %v675 = vpop.f32.mrf.mxu0
          %v676 = vadd.f32 0.0, %v675
          %v677 = vpop.f32.mrf.mxu0
          %v678 = vpop.f32.mrf.mxu0
          %v679 = vadd.f32 0.0, %v678
          %v680 = vpop.f32.mrf.mxu0
          %681 = vmatprep.mubr.bf16.mxu0 0
          %682 = vmatmul.mubr.bf16.gmra.mxu0 %v533
          %v683 = vpop.f32.mrf.mxu0
          %v684 = vadd.f32 0.0, %v683
          %v685 = vpop.f32.mrf.mxu0
          %v686 = vpop.f32.mrf.mxu0
          %v687 = vadd.f32 0.0, %v686
          %v688 = vpop.f32.mrf.mxu0
          %689 = vmatprep.mubr.bf16.mxu0 0
          %690 = vmatmul.mubr.bf16.gmra.mxu0 %v534
          %v691 = vpop.f32.mrf.mxu0
          %v692 = vadd.f32 0.0, %v691
          %v693 = vpop.f32.mrf.mxu0
          %v694 = vpop.f32.mrf.mxu0
          %v695 = vadd.f32 0.0, %v694
          %v696 = vpop.f32.mrf.mxu0
          %697 = vmatprep.mubr.bf16.mxu0 0
          %698 = vmatmul.mubr.bf16.gmra.mxu0 %v535
          %v699 = vpop.f32.mrf.mxu0
          %v700 = vadd.f32 0.0, %v699
          %v701 = vpop.f32.mrf.mxu0
          %v702 = vpop.f32.mrf.mxu0
          %v703 = vadd.f32 0.0, %v702
          %v704 = vpop.f32.mrf.mxu0
          %705 = vmatprep.mubr.bf16.mxu0 0
          %706 = vmatmul.mubr.bf16.gmra.mxu0 %v536
          %v707 = vpop.f32.mrf.mxu0
          %v708 = vadd.f32 0.0, %v707
          %v709 = vpop.f32.mrf.mxu0
          %v710 = vpop.f32.mrf.mxu0
          %v711 = vadd.f32 0.0, %v710
          %v712 = vpop.f32.mrf.mxu0
          %713 = vmatprep.mubr.bf16.mxu0 0
          %714 = vmatmul.mubr.bf16.gmra.mxu0 %v537
          %v715 = vpop.f32.mrf.mxu0
          %v716 = vadd.f32 0.0, %v715
          %v717 = vpop.f32.mrf.mxu0
          %v718 = vpop.f32.mrf.mxu0
          %v719 = vadd.f32 0.0, %v718
          %v720 = vpop.f32.mrf.mxu0
          %721 = vmatprep.mubr.bf16.mxu0 0
          %722 = vmatmul.mubr.bf16.gmra.mxu0 %v538
          %v723 = vpop.f32.mrf.mxu0
          %v724 = vadd.f32 0.0, %v723
          %v725 = vpop.f32.mrf.mxu0
          %v726 = vpop.f32.mrf.mxu0
          %v727 = vadd.f32 0.0, %v726
          %v728 = vpop.f32.mrf.mxu0
          %729 = vmatprep.mubr.bf16.mxu0 0
          %730 = vmatmul.mubr.bf16.gmra.mxu0 %v539
          %v731 = vpop.f32.mrf.mxu0
          %v732 = vadd.f32 0.0, %v731
          %v733 = vpop.f32.mrf.mxu0
          %v734 = vpop.f32.mrf.mxu0
          %v735 = vadd.f32 0.0, %v734
          %v736 = vpop.f32.mrf.mxu0
          %737 = vmatprep.mubr.bf16.mxu0 0
          %738 = vmatmul.mubr.bf16.gmra.mxu0 %v540
          %v739 = vpop.f32.mrf.mxu0
          %v740 = vadd.f32 0.0, %v739
          %v741 = vpop.f32.mrf.mxu0
          %v742 = vpop.f32.mrf.mxu0
          %v743 = vadd.f32 0.0, %v742
          %v744 = vpop.f32.mrf.mxu0
          %745 = vmatprep.mubr.bf16.mxu0 0
          %746 = vmatmul.mubr.bf16.gmra.mxu0 %v541
          %v747 = vpop.f32.mrf.mxu0
          %v748 = vadd.f32 0.0, %v747
          %v749 = vpop.f32.mrf.mxu0
          %v750 = vpop.f32.mrf.mxu0
          %v751 = vadd.f32 0.0, %v750
          %v752 = vpop.f32.mrf.mxu0
          %753 = vmatprep.mubr.bf16.mxu0 0
          %754 = vmatmul.mubr.bf16.gmra.mxu0 %v542
          %v755 = vpop.f32.mrf.mxu0
          %v756 = vadd.f32 0.0, %v755
          %v757 = vpop.f32.mrf.mxu0
          %v758 = vpop.f32.mrf.mxu0
          %v759 = vadd.f32 0.0, %v758
          %v760 = vpop.f32.mrf.mxu0
          %761 = vmatprep.mubr.bf16.mxu0 0
          %762 = vmatmul.mubr.bf16.gmra.mxu0 %v543
          %v763 = vpop.f32.mrf.mxu0
          %v764 = vadd.f32 0.0, %v763
          %v765 = vpop.f32.mrf.mxu0
          %v766 = vpop.f32.mrf.mxu0
          %v767 = vadd.f32 0.0, %v766
          %v768 = vpop.f32.mrf.mxu0
          %769 = vmatprep.mubr.bf16.mxu0 0
          %770 = vmatmul.mubr.bf16.gmra.mxu0 %v544
          %v771 = vpop.f32.mrf.mxu0
          %v772 = vadd.f32 0.0, %v771
          %v773 = vpop.f32.mrf.mxu0
          %v774 = vpop.f32.mrf.mxu0
          %v775 = vadd.f32 0.0, %v774
          %v776 = vpop.f32.mrf.mxu0
          %777 = vmatprep.mubr.bf16.mxu0 0
          %778 = vmatmul.mubr.bf16.gmra.mxu0 %v545
          %v779 = vpop.f32.mrf.mxu0
          %v780 = vadd.f32 0.0, %v779
          %v781 = vpop.f32.mrf.mxu0
          %v782 = vpop.f32.mrf.mxu0
          %v783 = vadd.f32 0.0, %v782
          %v784 = vpop.f32.mrf.mxu0
          %785 = vmatprep.mubr.bf16.mxu0 0
          %786 = vmatmul.mubr.bf16.gmra.mxu0 %v546
          %v787 = vpop.f32.mrf.mxu0
          %v788 = vadd.f32 0.0, %v787
          %v789 = vpop.f32.mrf.mxu0
          %v790 = vpop.f32.mrf.mxu0
          %v791 = vadd.f32 0.0, %v790
          %v792 = vpop.f32.mrf.mxu0
          %793 = vmatprep.mubr.bf16.mxu0 0
          %794 = vmatmul.mubr.bf16.gmra.mxu0 %v547
          %v795 = vpop.f32.mrf.mxu0
          %v796 = vadd.f32 0.0, %v795
          %v797 = vpop.f32.mrf.mxu0
          %v798 = vpop.f32.mrf.mxu0
          %v799 = vadd.f32 0.0, %v798
          %v800 = vpop.f32.mrf.mxu0
          %801 = vmatprep.mubr.bf16.mxu0 0
          %802 = vmatmul.mubr.bf16.gmra.mxu0 %v548
          %v803 = vpop.f32.mrf.mxu0
          %v804 = vadd.f32 0.0, %v803
          %v805 = vpop.f32.mrf.mxu0
          %v806 = vpop.f32.mrf.mxu0
          %v807 = vadd.f32 0.0, %v806
          %v808 = vpop.f32.mrf.mxu0
          %809 = vmatprep.mubr.bf16.mxu0 0
          %810 = vmatmul.mubr.bf16.gmra.mxu0 %v549
          %v811 = vpop.f32.mrf.mxu0
          %v812 = vadd.f32 0.0, %v811
          %v813 = vpop.f32.mrf.mxu0
          %v814 = vpop.f32.mrf.mxu0
          %v815 = vadd.f32 0.0, %v814
          %v816 = vpop.f32.mrf.mxu0
          %817 = vmatprep.mubr.bf16.mxu0 0
          %818 = vmatmul.mubr.bf16.gmra.mxu0 %v550
          %v819 = vpop.f32.mrf.mxu0
          %v820 = vadd.f32 0.0, %v819
          %v821 = vpop.f32.mrf.mxu0
          %v822 = vpop.f32.mrf.mxu0
          %v823 = vadd.f32 0.0, %v822
          %v824 = vpop.f32.mrf.mxu0
          %825 = vmatprep.mubr.bf16.mxu0 0
          %826 = vmatmul.mubr.bf16.gmra.mxu0 %v551
          %v827 = vpop.f32.mrf.mxu0
          %v828 = vadd.f32 0.0, %v827
          %v829 = vpop.f32.mrf.mxu0
          %v830 = vpop.f32.mrf.mxu0
          %v831 = vadd.f32 0.0, %v830
          %v832 = vpop.f32.mrf.mxu0
          %833 = vmatprep.mubr.bf16.mxu0 0
          %834 = vmatmul.mubr.bf16.gmra.mxu0 %v552
          %v835 = vpop.f32.mrf.mxu0
          %v836 = vadd.f32 0.0, %v835
          %v837 = vpop.f32.mrf.mxu0
          %v838 = vpop.f32.mrf.mxu0
          %v839 = vadd.f32 0.0, %v838
          %v840 = vpop.f32.mrf.mxu0
          %841 = vdwg.mxu0
          %v842 = vpack.c.bf16 %v655, %v652
          %v843 = vpack.c.bf16 %v663, %v660
          %v844 = vpack.c.bf16 %v671, %v668
          %v845 = vpack.c.bf16 %v679, %v676
          %v846 = vpack.c.bf16 %v687, %v684
          %v847 = vpack.c.bf16 %v695, %v692
          %v848 = vpack.c.bf16 %v703, %v700
          %v849 = vpack.c.bf16 %v711, %v708
          %v850 = vpack.c.bf16 %v719, %v716
          %v851 = vpack.c.bf16 %v727, %v724
          %v852 = vpack.c.bf16 %v735, %v732
          %v853 = vpack.c.bf16 %v743, %v740
          %v854 = vpack.c.bf16 %v751, %v748
          %v855 = vpack.c.bf16 %v759, %v756
          %v856 = vpack.c.bf16 %v767, %v764
          %v857 = vpack.c.bf16 %v775, %v772
          %v858 = vpack.c.bf16 %v783, %v780
          %v859 = vpack.c.bf16 %v791, %v788
          %v860 = vpack.c.bf16 %v799, %v796
          %v861 = vpack.c.bf16 %v807, %v804
          %v862 = vpack.c.bf16 %v815, %v812
          %v863 = vpack.c.bf16 %v823, %v820
          %v864 = vpack.c.bf16 %v831, %v828
          %v865 = vpack.c.bf16 %v839, %v836
          %v890 = vunpack.c.l.b16 %v842
          %v891 = vunpack.c.h.b16 %v842
          %v892 = vunpack.c.l.b16 %v843
          %v893 = vunpack.c.h.b16 %v843
          %v894 = vunpack.c.l.b16 %v844
          %v895 = vunpack.c.h.b16 %v844
          %v896 = vunpack.c.l.b16 %v845
          %v897 = vunpack.c.h.b16 %v845
          %v898 = vunpack.c.l.b16 %v846
          %v899 = vunpack.c.h.b16 %v846
          %v900 = vunpack.c.l.b16 %v847
          %v901 = vunpack.c.h.b16 %v847
          %v902 = vunpack.c.l.b16 %v848
          %v903 = vunpack.c.h.b16 %v848
          %v904 = vunpack.c.l.b16 %v849
          %v905 = vunpack.c.h.b16 %v849
          %v906 = vunpack.c.l.b16 %v850
          %v907 = vunpack.c.h.b16 %v850
          %v908 = vunpack.c.l.b16 %v851
          %v909 = vunpack.c.h.b16 %v851
          %v910 = vunpack.c.l.b16 %v852
          %v911 = vunpack.c.h.b16 %v852
          %v912 = vunpack.c.l.b16 %v853
          %v913 = vunpack.c.h.b16 %v853
          %v914 = vunpack.c.l.b16 %v854
          %v915 = vunpack.c.h.b16 %v854
          %v916 = vunpack.c.l.b16 %v855
          %v917 = vunpack.c.h.b16 %v855
          %v918 = vunpack.c.l.b16 %v856
          %v919 = vunpack.c.h.b16 %v856
          %v920 = vunpack.c.l.b16 %v857
          %v921 = vunpack.c.h.b16 %v857
          %v922 = vunpack.c.l.b16 %v858
          %v923 = vunpack.c.h.b16 %v858
          %v924 = vunpack.c.l.b16 %v859
          %v925 = vunpack.c.h.b16 %v859
          %v926 = vunpack.c.l.b16 %v860
          %v927 = vunpack.c.h.b16 %v860
          %v928 = vunpack.c.l.b16 %v861
          %v929 = vunpack.c.h.b16 %v861
          %v930 = vunpack.c.l.b16 %v862
          %v931 = vunpack.c.h.b16 %v862
          %v932 = vunpack.c.l.b16 %v863
          %v933 = vunpack.c.h.b16 %v863
          %v934 = vunpack.c.l.b16 %v864
          %v935 = vunpack.c.h.b16 %v864
          %v936 = vunpack.c.l.b16 %v865
          %v937 = vunpack.c.h.b16 %v865
          %v938 = vpack.c.b16 %v890, %v890
          %v939 = vpack.c.b16 %v891, %v891
          %v940 = vpack.c.b16 %v892, %v892
          %v941 = vpack.c.b16 %v893, %v893
          %v942 = vpack.c.b16 %v894, %v894
          %v943 = vpack.c.b16 %v895, %v895
          %v944 = vpack.c.b16 %v896, %v896
          %v945 = vpack.c.b16 %v897, %v897
          %v946 = vpack.c.b16 %v898, %v898
          %v947 = vpack.c.b16 %v899, %v899
          %v948 = vpack.c.b16 %v900, %v900
          %v949 = vpack.c.b16 %v901, %v901
          %v950 = vpack.c.b16 %v902, %v902
          %v951 = vpack.c.b16 %v903, %v903
          %v952 = vpack.c.b16 %v904, %v904
          %v953 = vpack.c.b16 %v905, %v905
          %v954 = vpack.c.b16 %v906, %v906
          %v955 = vpack.c.b16 %v907, %v907
          %v956 = vpack.c.b16 %v908, %v908
          %v957 = vpack.c.b16 %v909, %v909
          %v958 = vpack.c.b16 %v910, %v910
          %v959 = vpack.c.b16 %v911, %v911
          %v960 = vpack.c.b16 %v912, %v912
          %v961 = vpack.c.b16 %v913, %v913
          %v962 = vpack.c.b16 %v914, %v914
          %v963 = vpack.c.b16 %v915, %v915
          %v964 = vpack.c.b16 %v916, %v916
          %v965 = vpack.c.b16 %v917, %v917
          %v966 = vpack.c.b16 %v918, %v918
          %v967 = vpack.c.b16 %v919, %v919
          %v968 = vpack.c.b16 %v920, %v920
          %v969 = vpack.c.b16 %v921, %v921
          %v970 = vpack.c.b16 %v922, %v922
          %v971 = vpack.c.b16 %v923, %v923
          %v972 = vpack.c.b16 %v924, %v924
          %v973 = vpack.c.b16 %v925, %v925
          %v974 = vpack.c.b16 %v926, %v926
          %v975 = vpack.c.b16 %v927, %v927
          %v976 = vpack.c.b16 %v928, %v928
          %v977 = vpack.c.b16 %v929, %v929
          %v978 = vpack.c.b16 %v930, %v930
          %v979 = vpack.c.b16 %v931, %v931
          %v980 = vpack.c.b16 %v932, %v932
          %v981 = vpack.c.b16 %v933, %v933
          %v982 = vpack.c.b16 %v934, %v934
          %v983 = vpack.c.b16 %v935, %v935
          %v984 = vpack.c.b16 %v936, %v936
          %v985 = vpack.c.b16 %v937, %v937
          %1034 = vst [vmem:[#allocation3] sm:$0xf] %v938
          %1035 = vst [vmem:[#allocation3 + $0x4] sm:$0xf] %v939
          %1036 = vst [vmem:[#allocation3 + $0x8] sm:$0xf] %v940
          %1037 = vst [vmem:[#allocation3 + $0xc] sm:$0xf] %v941
          %1038 = vst [vmem:[#allocation3 + $0x10] sm:$0xf] %v942
          %1039 = vst [vmem:[#allocation3 + $0x14] sm:$0xf] %v943
          %1040 = vst [vmem:[#allocation3 + $0x18] sm:$0xf] %v944
          %1041 = vst [vmem:[#allocation3 + $0x1c] sm:$0xf] %v945
          %1042 = vst [vmem:[#allocation3 + $0x20] sm:$0xf] %v946
          %1043 = vst [vmem:[#allocation3 + $0x24] sm:$0xf] %v947
          %1044 = vst [vmem:[#allocation3 + $0x28] sm:$0xf] %v948
          %1045 = vst [vmem:[#allocation3 + $0x2c] sm:$0xf] %v949
          %1046 = vst [vmem:[#allocation3 + $0x30] sm:$0xf] %v950
          %1047 = vst [vmem:[#allocation3 + $0x34] sm:$0xf] %v951
          %1048 = vst [vmem:[#allocation3 + $0x38] sm:$0xf] %v952
          %1049 = vst [vmem:[#allocation3 + $0x3c] sm:$0xf] %v953
          %1050 = vst [vmem:[#allocation3 + $0x40] sm:$0xf] %v954
          %1051 = vst [vmem:[#allocation3 + $0x44] sm:$0xf] %v955
          %1052 = vst [vmem:[#allocation3 + $0x48] sm:$0xf] %v956
          %1053 = vst [vmem:[#allocation3 + $0x4c] sm:$0xf] %v957
          %1054 = vst [vmem:[#allocation3 + $0x50] sm:$0xf] %v958
          %1055 = vst [vmem:[#allocation3 + $0x54] sm:$0xf] %v959
          %1056 = vst [vmem:[#allocation3 + $0x58] sm:$0xf] %v960
          %1057 = vst [vmem:[#allocation3 + $0x5c] sm:$0xf] %v961
          %1058 = vst [vmem:[#allocation3 + $0x60] sm:$0xf] %v962
          %1059 = vst [vmem:[#allocation3 + $0x64] sm:$0xf] %v963
          %1060 = vst [vmem:[#allocation3 + $0x68] sm:$0xf] %v964
          %1061 = vst [vmem:[#allocation3 + $0x6c] sm:$0xf] %v965
          %1062 = vst [vmem:[#allocation3 + $0x70] sm:$0xf] %v966
          %1063 = vst [vmem:[#allocation3 + $0x74] sm:$0xf] %v967
          %1064 = vst [vmem:[#allocation3 + $0x78] sm:$0xf] %v968
          %1065 = vst [vmem:[#allocation3 + $0x7c] sm:$0xf] %v969
          %1066 = vst [vmem:[#allocation3 + $0x80] sm:$0xf] %v970
          %1067 = vst [vmem:[#allocation3 + $0x84] sm:$0xf] %v971
          %1068 = vst [vmem:[#allocation3 + $0x88] sm:$0xf] %v972
          %1069 = vst [vmem:[#allocation3 + $0x8c] sm:$0xf] %v973
          %1070 = vst [vmem:[#allocation3 + $0x90] sm:$0xf] %v974
          %1071 = vst [vmem:[#allocation3 + $0x94] sm:$0xf] %v975
          %1072 = vst [vmem:[#allocation3 + $0x98] sm:$0xf] %v976
          %1073 = vst [vmem:[#allocation3 + $0x9c] sm:$0xf] %v977
          %1074 = vst [vmem:[#allocation3 + $0xa0] sm:$0xf] %v978
          %1075 = vst [vmem:[#allocation3 + $0xa4] sm:$0xf] %v979
          %1076 = vst [vmem:[#allocation3 + $0xa8] sm:$0xf] %v980
          %1077 = vst [vmem:[#allocation3 + $0xac] sm:$0xf] %v981
          %1078 = vst [vmem:[#allocation3 + $0xb0] sm:$0xf] %v982
          %1079 = vst [vmem:[#allocation3 + $0xb4] sm:$0xf] %v983
          %1080 = vst [vmem:[#allocation3 + $0xb8] sm:$0xf] %v984
          %1081 = vst [vmem:[#allocation3 + $0xbc] sm:$0xf] %v985
        $region56: #{tpu_custom_call.1} parent=39 // pred_fallthru
          _
        %v1082 = vld [vmem:[%s355] sm:$0xff]
        %v1083 = vld [vmem:[%s355 + $0x8] sm:$0xff]
        %v1084 = vld [vmem:[%s355 + $0x10] sm:$0xff]
        %v1085 = vld [vmem:[%s355 + $0x18] sm:$0xff]
        %v1086 = vld [vmem:[%s355 + $0x20] sm:$0xff]
        %v1087 = vld [vmem:[%s355 + $0x28] sm:$0xff]
        %v1088 = vld [vmem:[%s355 + $0x30] sm:$0xff]
        %v1089 = vld [vmem:[%s355 + $0x38] sm:$0xff]
        %v1090 = vld [vmem:[%s355 + $0x40] sm:$0xff]
        %v1091 = vld [vmem:[%s355 + $0x48] sm:$0xff]
        %v1092 = vld [vmem:[%s355 + $0x50] sm:$0xff]
        %v1093 = vld [vmem:[%s355 + $0x58] sm:$0xff]
        %v1094 = vunpack.c.l.s8.bf16 %v1082
        %v1095 = vunpack.c.l.s8.bf16 %v1083
        %v1096 = vunpack.c.l.s8.bf16 %v1084
        %v1097 = vunpack.c.h.s8.bf16 %v1082
        %v1098 = vunpack.c.h.s8.bf16 %v1083
        %v1099 = vunpack.c.h.s8.bf16 %v1084
        %v1100 = vunpack.c.l.s8.bf16 %v1085
        %v1101 = vunpack.c.l.s8.bf16 %v1086
        %v1102 = vunpack.c.l.s8.bf16 %v1087
        %v1103 = vunpack.c.h.s8.bf16 %v1085
        %v1104 = vunpack.c.h.s8.bf16 %v1086
        %v1105 = vunpack.c.h.s8.bf16 %v1087
        %v1106 = vunpack.c.l.s8.bf16 %v1088
        %v1107 = vunpack.c.l.s8.bf16 %v1089
        %v1108 = vunpack.c.l.s8.bf16 %v1090
        %v1109 = vunpack.c.h.s8.bf16 %v1088
        %v1110 = vunpack.c.h.s8.bf16 %v1089
        %v1111 = vunpack.c.h.s8.bf16 %v1090
        %v1112 = vunpack.c.l.s8.bf16 %v1091
        %v1113 = vunpack.c.l.s8.bf16 %v1092
        %v1114 = vunpack.c.l.s8.bf16 %v1093
        %v1115 = vunpack.c.h.s8.bf16 %v1091
        %v1116 = vunpack.c.h.s8.bf16 %v1092
        %v1117 = vunpack.c.h.s8.bf16 %v1093
        %v1118 = vld [vmem:[#allocation3] sm:$0xf]
        %v1119 = vld [vmem:[#allocation3 + $0x4] sm:$0xf]
        %v1120 = vld [vmem:[#allocation3 + $0x8] sm:$0xf]
        %v1121 = vld [vmem:[#allocation3 + $0xc] sm:$0xf]
        %v1122 = vld [vmem:[#allocation3 + $0x10] sm:$0xf]
        %v1123 = vld [vmem:[#allocation3 + $0x14] sm:$0xf]
        %v1124 = vld [vmem:[#allocation3 + $0x18] sm:$0xf]
        %v1125 = vld [vmem:[#allocation3 + $0x1c] sm:$0xf]
        %v1126 = vld [vmem:[#allocation3 + $0x20] sm:$0xf]
        %v1127 = vld [vmem:[#allocation3 + $0x24] sm:$0xf]
        %v1128 = vld [vmem:[#allocation3 + $0x28] sm:$0xf]
        %v1129 = vld [vmem:[#allocation3 + $0x2c] sm:$0xf]
        %v1130 = vld [vmem:[#allocation3 + $0x30] sm:$0xf]
        %v1131 = vld [vmem:[#allocation3 + $0x34] sm:$0xf]
        %v1132 = vld [vmem:[#allocation3 + $0x38] sm:$0xf]
        %v1133 = vld [vmem:[#allocation3 + $0x3c] sm:$0xf]
        %v1134 = vld [vmem:[#allocation3 + $0x40] sm:$0xf]
        %v1135 = vld [vmem:[#allocation3 + $0x44] sm:$0xf]
        %v1136 = vld [vmem:[#allocation3 + $0x48] sm:$0xf]
        %v1137 = vld [vmem:[#allocation3 + $0x4c] sm:$0xf]
        %v1138 = vld [vmem:[#allocation3 + $0x50] sm:$0xf]
        %v1139 = vld [vmem:[#allocation3 + $0x54] sm:$0xf]
        %v1140 = vld [vmem:[#allocation3 + $0x58] sm:$0xf]
        %v1141 = vld [vmem:[#allocation3 + $0x5c] sm:$0xf]
        %v1142 = vld [vmem:[#allocation3 + $0x60] sm:$0xf]
        %v1143 = vld [vmem:[#allocation3 + $0x64] sm:$0xf]
        %v1144 = vld [vmem:[#allocation3 + $0x68] sm:$0xf]
        %v1145 = vld [vmem:[#allocation3 + $0x6c] sm:$0xf]
        %v1146 = vld [vmem:[#allocation3 + $0x70] sm:$0xf]
        %v1147 = vld [vmem:[#allocation3 + $0x74] sm:$0xf]
        %v1148 = vld [vmem:[#allocation3 + $0x78] sm:$0xf]
        %v1149 = vld [vmem:[#allocation3 + $0x7c] sm:$0xf]
        %v1150 = vld [vmem:[#allocation3 + $0x80] sm:$0xf]
        %v1151 = vld [vmem:[#allocation3 + $0x84] sm:$0xf]
        %v1152 = vld [vmem:[#allocation3 + $0x88] sm:$0xf]
        %v1153 = vld [vmem:[#allocation3 + $0x8c] sm:$0xf]
        %v1154 = vld [vmem:[#allocation3 + $0x90] sm:$0xf]
        %v1155 = vld [vmem:[#allocation3 + $0x94] sm:$0xf]
        %v1156 = vld [vmem:[#allocation3 + $0x98] sm:$0xf]
        %v1157 = vld [vmem:[#allocation3 + $0x9c] sm:$0xf]
        %v1158 = vld [vmem:[#allocation3 + $0xa0] sm:$0xf]
        %v1159 = vld [vmem:[#allocation3 + $0xa4] sm:$0xf]
        %v1160 = vld [vmem:[#allocation3 + $0xa8] sm:$0xf]
        %v1161 = vld [vmem:[#allocation3 + $0xac] sm:$0xf]
        %v1162 = vld [vmem:[#allocation3 + $0xb0] sm:$0xf]
        %v1163 = vld [vmem:[#allocation3 + $0xb4] sm:$0xf]
        %v1164 = vld [vmem:[#allocation3 + $0xb8] sm:$0xf]
        %v1165 = vld [vmem:[#allocation3 + $0xbc] sm:$0xf]
        %v1214 = vunpack.c.l.b16 %v1118
        %v1215 = vunpack.c.l.b16 %v1119
        %v1216 = vunpack.c.l.b16 %v1120
        %v1217 = vunpack.c.l.b16 %v1121
        %v1218 = vunpack.c.l.b16 %v1122
        %v1219 = vunpack.c.l.b16 %v1123
        %v1220 = vunpack.c.l.b16 %v1124
        %v1221 = vunpack.c.l.b16 %v1125
        %v1222 = vunpack.c.l.b16 %v1126
        %v1223 = vunpack.c.l.b16 %v1127
        %v1224 = vunpack.c.l.b16 %v1128
        %v1225 = vunpack.c.l.b16 %v1129
        %v1226 = vunpack.c.l.b16 %v1130
        %v1227 = vunpack.c.l.b16 %v1131
        %v1228 = vunpack.c.l.b16 %v1132
        %v1229 = vunpack.c.l.b16 %v1133
        %v1230 = vunpack.c.l.b16 %v1134
        %v1231 = vunpack.c.l.b16 %v1135
        %v1232 = vunpack.c.l.b16 %v1136
        %v1233 = vunpack.c.l.b16 %v1137
        %v1234 = vunpack.c.l.b16 %v1138
        %v1235 = vunpack.c.l.b16 %v1139
        %v1236 = vunpack.c.l.b16 %v1140
        %v1237 = vunpack.c.l.b16 %v1141
        %v1238 = vunpack.c.l.b16 %v1142
        %v1239 = vunpack.c.l.b16 %v1143
        %v1240 = vunpack.c.l.b16 %v1144
        %v1241 = vunpack.c.l.b16 %v1145
        %v1242 = vunpack.c.l.b16 %v1146
        %v1243 = vunpack.c.l.b16 %v1147
        %v1244 = vunpack.c.l.b16 %v1148
        %v1245 = vunpack.c.l.b16 %v1149
        %v1246 = vunpack.c.l.b16 %v1150
        %v1247 = vunpack.c.l.b16 %v1151
        %v1248 = vunpack.c.l.b16 %v1152
        %v1249 = vunpack.c.l.b16 %v1153
        %v1250 = vunpack.c.l.b16 %v1154
        %v1251 = vunpack.c.l.b16 %v1155
        %v1252 = vunpack.c.l.b16 %v1156
        %v1253 = vunpack.c.l.b16 %v1157
        %v1254 = vunpack.c.l.b16 %v1158
        %v1255 = vunpack.c.l.b16 %v1159
        %v1256 = vunpack.c.l.b16 %v1160
        %v1257 = vunpack.c.l.b16 %v1161
        %v1258 = vunpack.c.l.b16 %v1162
        %v1259 = vunpack.c.l.b16 %v1163
        %v1260 = vunpack.c.l.b16 %v1164
        %v1261 = vunpack.c.l.b16 %v1165
        %v1262 = vpack.c.b16 %v1215, %v1214
        %v1263 = vpack.c.b16 %v1217, %v1216
        %v1264 = vpack.c.b16 %v1219, %v1218
        %v1265 = vpack.c.b16 %v1221, %v1220
        %v1266 = vpack.c.b16 %v1223, %v1222
        %v1267 = vpack.c.b16 %v1225, %v1224
        %v1268 = vpack.c.b16 %v1227, %v1226
        %v1269 = vpack.c.b16 %v1229, %v1228
        %v1270 = vpack.c.b16 %v1231, %v1230
        %v1271 = vpack.c.b16 %v1233, %v1232
        %v1272 = vpack.c.b16 %v1235, %v1234
        %v1273 = vpack.c.b16 %v1237, %v1236
        %v1274 = vpack.c.b16 %v1239, %v1238
        %v1275 = vpack.c.b16 %v1241, %v1240
        %v1276 = vpack.c.b16 %v1243, %v1242
        %v1277 = vpack.c.b16 %v1245, %v1244
        %v1278 = vpack.c.b16 %v1247, %v1246
        %v1279 = vpack.c.b16 %v1249, %v1248
        %v1280 = vpack.c.b16 %v1251, %v1250
        %v1281 = vpack.c.b16 %v1253, %v1252
        %v1282 = vpack.c.b16 %v1255, %v1254
        %v1283 = vpack.c.b16 %v1257, %v1256
        %v1284 = vpack.c.b16 %v1259, %v1258
        %v1285 = vpack.c.b16 %v1261, %v1260
        %1310 = vmatprep.subr.bf16.mxu0 0
        %1311 = vmatpush1.bf16.msra.mxu0 %v1269
        %1312 = vmatprep.subr.bf16.mxu0 0
        %1313 = vmatpush1.bf16.msra.mxu0 %v1268
        %1314 = vmatprep.subr.bf16.mxu0 0
        %1315 = vmatpush1.bf16.msra.mxu0 %v1267
        %1316 = vmatprep.subr.bf16.mxu0 0
        %1317 = vmatpush1.bf16.msra.mxu0 %v1266
        %1318 = vmatprep.subr.bf16.mxu0 0
        %1319 = vmatpush1.bf16.msra.mxu0 %v1265
        %1320 = vmatprep.subr.bf16.mxu0 0
        %1321 = vmatpush1.bf16.msra.mxu0 %v1264
        %1322 = vmatprep.subr.bf16.mxu0 0
        %1323 = vmatpush1.bf16.msra.mxu0 %v1263
        %1324 = vmatprep.subr.bf16.mxu0 0
        %1325 = vmatpush1.bf16.msra.mxu0 %v1262
        %1326 = vmatprep.subr.bf16.mxu0 0
        %1327 = vmatpush2.bf16.msra.mxu0 %v1277
        %1328 = vmatprep.subr.bf16.mxu0 0
        %1329 = vmatpush2.bf16.msra.mxu0 %v1276
        %1330 = vmatprep.subr.bf16.mxu0 0
        %1331 = vmatpush2.bf16.msra.mxu0 %v1275
        %1332 = vmatprep.subr.bf16.mxu0 0
        %1333 = vmatpush2.bf16.msra.mxu0 %v1274
        %1334 = vmatprep.subr.bf16.mxu0 0
        %1335 = vmatpush2.bf16.msra.mxu0 %v1273
        %1336 = vmatprep.subr.bf16.mxu0 0
        %1337 = vmatpush2.bf16.msra.mxu0 %v1272
        %1338 = vmatprep.subr.bf16.mxu0 0
        %1339 = vmatpush2.bf16.msra.mxu0 %v1271
        %1340 = vmatprep.subr.bf16.mxu0 0
        %1341 = vmatpush2.bf16.msra.mxu0 %v1270
        %1342 = vmatprep.mubr.bf16.mxu0 %v1095
        %1343 = vmatmul.mubr.bf16.gmra.mxu0 %v1094
        %v1344 = vpop.f32.mrf.mxu0
        %v1345 = vadd.f32 0.0, %v1344
        %v1346 = vpop.f32.mrf.mxu0
        %v1347 = vpop.f32.mrf.mxu0
        %v1348 = vadd.f32 0.0, %v1347
        %v1349 = vpop.f32.mrf.mxu0
        %1350 = vmatprep.mubr.bf16.mxu0 %v1098
        %1351 = vmatmul.mubr.bf16.gmra.mxu0 %v1097
        %v1352 = vpop.f32.mrf.mxu0
        %v1353 = vadd.f32 0.0, %v1352
        %v1354 = vpop.f32.mrf.mxu0
        %v1355 = vpop.f32.mrf.mxu0
        %v1356 = vadd.f32 0.0, %v1355
        %v1357 = vpop.f32.mrf.mxu0
        %1358 = vmatprep.mubr.bf16.mxu0 %v1101
        %1359 = vmatmul.mubr.bf16.gmra.mxu0 %v1100
        %v1360 = vpop.f32.mrf.mxu0
        %v1361 = vadd.f32 0.0, %v1360
        %v1362 = vpop.f32.mrf.mxu0
        %v1363 = vpop.f32.mrf.mxu0
        %v1364 = vadd.f32 0.0, %v1363
        %v1365 = vpop.f32.mrf.mxu0
        %1366 = vmatprep.mubr.bf16.mxu0 %v1104
        %1367 = vmatmul.mubr.bf16.gmra.mxu0 %v1103
        %v1368 = vpop.f32.mrf.mxu0
        %v1369 = vadd.f32 0.0, %v1368
        %v1370 = vpop.f32.mrf.mxu0
        %v1371 = vpop.f32.mrf.mxu0
        %v1372 = vadd.f32 0.0, %v1371
        %v1373 = vpop.f32.mrf.mxu0
        %1374 = vmatprep.mubr.bf16.mxu0 %v1107
        %1375 = vmatmul.mubr.bf16.gmra.mxu0 %v1106
        %v1376 = vpop.f32.mrf.mxu0
        %v1377 = vadd.f32 0.0, %v1376
        %v1378 = vpop.f32.mrf.mxu0
        %v1379 = vpop.f32.mrf.mxu0
        %v1380 = vadd.f32 0.0, %v1379
        %v1381 = vpop.f32.mrf.mxu0
        %1382 = vmatprep.mubr.bf16.mxu0 %v1110
        %1383 = vmatmul.mubr.bf16.gmra.mxu0 %v1109
        %v1384 = vpop.f32.mrf.mxu0
        %v1385 = vadd.f32 0.0, %v1384
        %v1386 = vpop.f32.mrf.mxu0
        %v1387 = vpop.f32.mrf.mxu0
        %v1388 = vadd.f32 0.0, %v1387
        %v1389 = vpop.f32.mrf.mxu0
        %1390 = vmatprep.mubr.bf16.mxu0 %v1113
        %1391 = vmatmul.mubr.bf16.gmra.mxu0 %v1112
        %v1392 = vpop.f32.mrf.mxu0
        %v1393 = vadd.f32 0.0, %v1392
        %v1394 = vpop.f32.mrf.mxu0
        %v1395 = vpop.f32.mrf.mxu0
        %v1396 = vadd.f32 0.0, %v1395
        %v1397 = vpop.f32.mrf.mxu0
        %1398 = vmatprep.mubr.bf16.mxu0 %v1116
        %1399 = vmatmul.mubr.bf16.gmra.mxu0 %v1115
        %v1400 = vpop.f32.mrf.mxu0
        %v1401 = vadd.f32 0.0, %v1400
        %v1402 = vpop.f32.mrf.mxu0
        %v1403 = vpop.f32.mrf.mxu0
        %v1404 = vadd.f32 0.0, %v1403
        %v1405 = vpop.f32.mrf.mxu0
        %1406 = vdwg.mxu0
        %1407 = vmatprep.subr.bf16.mxu0 0
        %1408 = vmatpush1.bf16.msra.mxu0 %v1285
        %1409 = vmatprep.subr.bf16.mxu0 0
        %1410 = vmatpush1.bf16.msra.mxu0 %v1284
        %1411 = vmatprep.subr.bf16.mxu0 0
        %1412 = vmatpush1.bf16.msra.mxu0 %v1283
        %1413 = vmatprep.subr.bf16.mxu0 0
        %1414 = vmatpush1.bf16.msra.mxu0 %v1282
        %1415 = vmatprep.subr.bf16.mxu0 0
        %1416 = vmatpush1.bf16.msra.mxu0 %v1281
        %1417 = vmatprep.subr.bf16.mxu0 0
        %1418 = vmatpush1.bf16.msra.mxu0 %v1280
        %1419 = vmatprep.subr.bf16.mxu0 0
        %1420 = vmatpush1.bf16.msra.mxu0 %v1279
        %1421 = vmatprep.subr.bf16.mxu0 0
        %1422 = vmatpush1.bf16.msra.mxu0 %v1278
        %1423 = vmatprep.subr.bf16.mxu0 0
        %1424 = vmatpush2.bf16.msra.mxu0 0
        %1425 = vmatprep.subr.bf16.mxu0 0
        %1426 = vmatpush2.bf16.msra.mxu0 0
        %1427 = vmatprep.subr.bf16.mxu0 0
        %1428 = vmatpush2.bf16.msra.mxu0 0
        %1429 = vmatprep.subr.bf16.mxu0 0
        %1430 = vmatpush2.bf16.msra.mxu0 0
        %1431 = vmatprep.subr.bf16.mxu0 0
        %1432 = vmatpush2.bf16.msra.mxu0 0
        %1433 = vmatprep.subr.bf16.mxu0 0
        %1434 = vmatpush2.bf16.msra.mxu0 0
        %1435 = vmatprep.subr.bf16.mxu0 0
        %1436 = vmatpush2.bf16.msra.mxu0 0
        %1437 = vmatprep.subr.bf16.mxu0 0
        %1438 = vmatpush2.bf16.msra.mxu0 0
        %1439 = vmatprep.mubr.bf16.mxu0 0
        %1440 = vmatmul.mubr.bf16.gmra.mxu0 %v1096
        %v1441 = vpop.f32.mrf.mxu0
        %v1442 = vadd.f32 %v1345, %v1441
        %v1443 = vpop.f32.mrf.mxu0
        %v1444 = vpop.f32.mrf.mxu0
        %v1445 = vadd.f32 %v1348, %v1444
        %v1446 = vpop.f32.mrf.mxu0
        %1447 = vmatprep.mubr.bf16.mxu0 0
        %1448 = vmatmul.mubr.bf16.gmra.mxu0 %v1099
        %v1449 = vpop.f32.mrf.mxu0
        %v1450 = vadd.f32 %v1353, %v1449
        %v1451 = vpop.f32.mrf.mxu0
        %v1452 = vpop.f32.mrf.mxu0
        %v1453 = vadd.f32 %v1356, %v1452
        %v1454 = vpop.f32.mrf.mxu0
        %1455 = vmatprep.mubr.bf16.mxu0 0
        %1456 = vmatmul.mubr.bf16.gmra.mxu0 %v1102
        %v1457 = vpop.f32.mrf.mxu0
        %v1458 = vadd.f32 %v1361, %v1457
        %v1459 = vpop.f32.mrf.mxu0
        %v1460 = vpop.f32.mrf.mxu0
        %v1461 = vadd.f32 %v1364, %v1460
        %v1462 = vpop.f32.mrf.mxu0
        %1463 = vmatprep.mubr.bf16.mxu0 0
        %1464 = vmatmul.mubr.bf16.gmra.mxu0 %v1105
        %v1465 = vpop.f32.mrf.mxu0
        %v1466 = vadd.f32 %v1369, %v1465
        %v1467 = vpop.f32.mrf.mxu0
        %v1468 = vpop.f32.mrf.mxu0
        %v1469 = vadd.f32 %v1372, %v1468
        %v1470 = vpop.f32.mrf.mxu0
        %1471 = vmatprep.mubr.bf16.mxu0 0
        %1472 = vmatmul.mubr.bf16.gmra.mxu0 %v1108
        %v1473 = vpop.f32.mrf.mxu0
        %v1474 = vadd.f32 %v1377, %v1473
        %v1475 = vpop.f32.mrf.mxu0
        %v1476 = vpop.f32.mrf.mxu0
        %v1477 = vadd.f32 %v1380, %v1476
        %v1478 = vpop.f32.mrf.mxu0
        %1479 = vmatprep.mubr.bf16.mxu0 0
        %1480 = vmatmul.mubr.bf16.gmra.mxu0 %v1111
        %v1481 = vpop.f32.mrf.mxu0
        %v1482 = vadd.f32 %v1385, %v1481
        %v1483 = vpop.f32.mrf.mxu0
        %v1484 = vpop.f32.mrf.mxu0
        %v1485 = vadd.f32 %v1388, %v1484
        %v1486 = vpop.f32.mrf.mxu0
        %1487 = vmatprep.mubr.bf16.mxu0 0
        %1488 = vmatmul.mubr.bf16.gmra.mxu0 %v1114
        %v1489 = vpop.f32.mrf.mxu0
        %v1490 = vadd.f32 %v1393, %v1489
        %v1491 = vpop.f32.mrf.mxu0
        %v1492 = vpop.f32.mrf.mxu0
        %v1493 = vadd.f32 %v1396, %v1492
        %v1494 = vpop.f32.mrf.mxu0
        %1495 = vmatprep.mubr.bf16.mxu0 0
        %1496 = vmatmul.mubr.bf16.gmra.mxu0 %v1117
        %v1497 = vpop.f32.mrf.mxu0
        %v1498 = vadd.f32 %v1401, %v1497
        %v1499 = vpop.f32.mrf.mxu0
        %v1500 = vpop.f32.mrf.mxu0
        %v1501 = vadd.f32 %v1404, %v1500
        %v1502 = vpop.f32.mrf.mxu0
        %1503 = vdwg.mxu0
        %v1504 = vld [vmem:[%s365] sm:$0xff]
        %v1505 = vld [vmem:[%s365 + $0x8] sm:$0xff]
        %v1506 = vld [vmem:[%s365 + $0x10] sm:$0xff]
        %v1507 = vld [vmem:[%s365 + $0x18] sm:$0xff]
        %v1508 = vld [vmem:[%s365 + $0x20] sm:$0xff]
        %v1509 = vld [vmem:[%s365 + $0x28] sm:$0xff]
        %v1510 = vld [vmem:[%s365 + $0x30] sm:$0xff]
        %v1511 = vld [vmem:[%s365 + $0x38] sm:$0xff]
        %v1512 = vld [vmem:[%s365 + $0x40] sm:$0xff]
        %v1513 = vld [vmem:[%s365 + $0x48] sm:$0xff]
        %v1514 = vld [vmem:[%s365 + $0x50] sm:$0xff]
        %v1515 = vld [vmem:[%s365 + $0x58] sm:$0xff]
        %v1516 = vld [vmem:[%s365 + $0x60] sm:$0xff]
        %v1517 = vld [vmem:[%s365 + $0x68] sm:$0xff]
        %v1518 = vld [vmem:[%s365 + $0x70] sm:$0xff]
        %v1519 = vld [vmem:[%s365 + $0x78] sm:$0xff]
        %1521 = vset.pattern.permute.xlu0 0
        %1522 = vperm.xlu0 %1521, %v1504
        %v1523 = vpop.permute.xlu0 %1522
        %1526 = vset.pattern.permute.xlu0 0
        %1527 = vperm.xlu0 %1526, %v1505
        %v1528 = vpop.permute.xlu0 %1527
        %1531 = vset.pattern.permute.xlu0 0
        %1532 = vperm.xlu0 %1531, %v1506
        %v1533 = vpop.permute.xlu0 %1532
        %1536 = vset.pattern.permute.xlu0 0
        %1537 = vperm.xlu0 %1536, %v1507
        %v1538 = vpop.permute.xlu0 %1537
        %1541 = vset.pattern.permute.xlu0 0
        %1542 = vperm.xlu0 %1541, %v1508
        %v1543 = vpop.permute.xlu0 %1542
        %1546 = vset.pattern.permute.xlu0 0
        %1547 = vperm.xlu0 %1546, %v1509
        %v1548 = vpop.permute.xlu0 %1547
        %1551 = vset.pattern.permute.xlu0 0
        %1552 = vperm.xlu0 %1551, %v1510
        %v1553 = vpop.permute.xlu0 %1552
        %1556 = vset.pattern.permute.xlu0 0
        %1557 = vperm.xlu0 %1556, %v1511
        %v1558 = vpop.permute.xlu0 %1557
        %1561 = vset.pattern.permute.xlu0 0
        %1562 = vperm.xlu0 %1561, %v1512
        %v1563 = vpop.permute.xlu0 %1562
        %1566 = vset.pattern.permute.xlu0 0
        %1567 = vperm.xlu0 %1566, %v1513
        %v1568 = vpop.permute.xlu0 %1567
        %1571 = vset.pattern.permute.xlu0 0
        %1572 = vperm.xlu0 %1571, %v1514
        %v1573 = vpop.permute.xlu0 %1572
        %1576 = vset.pattern.permute.xlu0 0
        %1577 = vperm.xlu0 %1576, %v1515
        %v1578 = vpop.permute.xlu0 %1577
        %1581 = vset.pattern.permute.xlu0 0
        %1582 = vperm.xlu0 %1581, %v1516
        %v1583 = vpop.permute.xlu0 %1582
        %1586 = vset.pattern.permute.xlu0 0
        %1587 = vperm.xlu0 %1586, %v1517
        %v1588 = vpop.permute.xlu0 %1587
        %1591 = vset.pattern.permute.xlu0 0
        %1592 = vperm.xlu0 %1591, %v1518
        %v1593 = vpop.permute.xlu0 %1592
        %1596 = vset.pattern.permute.xlu0 0
        %1597 = vperm.xlu0 %1596, %v1519
        %v1598 = vpop.permute.xlu0 %1597
        %v1600 = vmul.f32 %v1442, %v1523
        %v1601 = vmul.f32 %v1445, %v1528
        %v1602 = vmul.f32 %v1450, %v1533
        %v1603 = vmul.f32 %v1453, %v1538
        %v1604 = vmul.f32 %v1458, %v1543
        %v1605 = vmul.f32 %v1461, %v1548
        %v1606 = vmul.f32 %v1466, %v1553
        %v1607 = vmul.f32 %v1469, %v1558
        %v1608 = vmul.f32 %v1474, %v1563
        %v1609 = vmul.f32 %v1477, %v1568
        %v1610 = vmul.f32 %v1482, %v1573
        %v1611 = vmul.f32 %v1485, %v1578
        %v1612 = vmul.f32 %v1490, %v1583
        %v1613 = vmul.f32 %v1493, %v1588
        %v1614 = vmul.f32 %v1498, %v1593
        %v1615 = vmul.f32 %v1501, %v1598
        // Predicated region
        $region57: #{tpu_custom_call.1} parent=39 // pred_check
          %p1616 = pneg %p374
        $region58: #{tpu_custom_call.1} parent=39 // pred_check_branch
          %1618 = sbr.rel (%p1616) target = $region60
        $region59: #{tpu_custom_call.1} parent=39 // pred_region
          %s1619 = scalar_lea.vmem [#allocation4], %s372
          %1620 = vst [vmem:[%s1619] sm:$0xff] %v1600
          %1621 = vst [vmem:[%s1619 + $0x8] sm:$0xff] %v1601
          %1622 = vst [vmem:[%s1619 + $0x10] sm:$0xff] %v1602
          %1623 = vst [vmem:[%s1619 + $0x18] sm:$0xff] %v1603
          %1624 = vst [vmem:[%s1619 + $0x20] sm:$0xff] %v1604
          %1625 = vst [vmem:[%s1619 + $0x28] sm:$0xff] %v1605
          %1626 = vst [vmem:[%s1619 + $0x30] sm:$0xff] %v1606
          %1627 = vst [vmem:[%s1619 + $0x38] sm:$0xff] %v1607
          %1628 = vst [vmem:[%s1619 + $0x40] sm:$0xff] %v1608
          %1629 = vst [vmem:[%s1619 + $0x48] sm:$0xff] %v1609
          %1630 = vst [vmem:[%s1619 + $0x50] sm:$0xff] %v1610
          %1631 = vst [vmem:[%s1619 + $0x58] sm:$0xff] %v1611
          %1632 = vst [vmem:[%s1619 + $0x60] sm:$0xff] %v1612
          %1633 = vst [vmem:[%s1619 + $0x68] sm:$0xff] %v1613
          %1634 = vst [vmem:[%s1619 + $0x70] sm:$0xff] %v1614
          %1635 = vst [vmem:[%s1619 + $0x78] sm:$0xff] %v1615
        $region60: #{tpu_custom_call.1} parent=39 // pred_fallthru
          _
        %p1636 = scmp.ne.s32.totalorder %s29, 0
        // Predicated region
        $region61: #{tpu_custom_call.1} parent=39 // pred_check
          %p1637 = pneg %p1636
        $region62: #{tpu_custom_call.1} parent=39 // pred_check_branch
          %1639 = sbr.rel (%p1637) target = $region64
        $region63: #{tpu_custom_call.1} parent=39 // pred_region
          %s1640 = scalar_lea.vmem [#allocation4], %s372
          %v1641 = vld [vmem:[%s1640] sm:$0xff]
          %v1642 = vld [vmem:[%s1640 + $0x8] sm:$0xff]
          %v1643 = vld [vmem:[%s1640 + $0x10] sm:$0xff]
          %v1644 = vld [vmem:[%s1640 + $0x18] sm:$0xff]
          %v1645 = vld [vmem:[%s1640 + $0x20] sm:$0xff]
          %v1646 = vld [vmem:[%s1640 + $0x28] sm:$0xff]
          %v1647 = vld [vmem:[%s1640 + $0x30] sm:$0xff]
          %v1648 = vld [vmem:[%s1640 + $0x38] sm:$0xff]
          %v1649 = vld [vmem:[%s1640 + $0x40] sm:$0xff]
          %v1650 = vld [vmem:[%s1640 + $0x48] sm:$0xff]
          %v1651 = vld [vmem:[%s1640 + $0x50] sm:$0xff]
          %v1652 = vld [vmem:[%s1640 + $0x58] sm:$0xff]
          %v1653 = vld [vmem:[%s1640 + $0x60] sm:$0xff]
          %v1654 = vld [vmem:[%s1640 + $0x68] sm:$0xff]
          %v1655 = vld [vmem:[%s1640 + $0x70] sm:$0xff]
          %v1656 = vld [vmem:[%s1640 + $0x78] sm:$0xff]
          %v1657 = vadd.f32 %v1641, %v1600
          %v1658 = vadd.f32 %v1642, %v1601
          %v1659 = vadd.f32 %v1643, %v1602
          %v1660 = vadd.f32 %v1644, %v1603
          %v1661 = vadd.f32 %v1645, %v1604
          %v1662 = vadd.f32 %v1646, %v1605
          %v1663 = vadd.f32 %v1647, %v1606
          %v1664 = vadd.f32 %v1648, %v1607
          %v1665 = vadd.f32 %v1649, %v1608
          %v1666 = vadd.f32 %v1650, %v1609
          %v1667 = vadd.f32 %v1651, %v1610
          %v1668 = vadd.f32 %v1652, %v1611
          %v1669 = vadd.f32 %v1653, %v1612
          %v1670 = vadd.f32 %v1654, %v1613
          %v1671 = vadd.f32 %v1655, %v1614
          %v1672 = vadd.f32 %v1656, %v1615
          %1673 = vst [vmem:[%s1640] sm:$0xff] %v1657
          %1674 = vst [vmem:[%s1640 + $0x8] sm:$0xff] %v1658
          %1675 = vst [vmem:[%s1640 + $0x10] sm:$0xff] %v1659
          %1676 = vst [vmem:[%s1640 + $0x18] sm:$0xff] %v1660
          %1677 = vst [vmem:[%s1640 + $0x20] sm:$0xff] %v1661
          %1678 = vst [vmem:[%s1640 + $0x28] sm:$0xff] %v1662
          %1679 = vst [vmem:[%s1640 + $0x30] sm:$0xff] %v1663
          %1680 = vst [vmem:[%s1640 + $0x38] sm:$0xff] %v1664
          %1681 = vst [vmem:[%s1640 + $0x40] sm:$0xff] %v1665
          %1682 = vst [vmem:[%s1640 + $0x48] sm:$0xff] %v1666
          %1683 = vst [vmem:[%s1640 + $0x50] sm:$0xff] %v1667
          %1684 = vst [vmem:[%s1640 + $0x58] sm:$0xff] %v1668
          %1685 = vst [vmem:[%s1640 + $0x60] sm:$0xff] %v1669
          %1686 = vst [vmem:[%s1640 + $0x68] sm:$0xff] %v1670
          %1687 = vst [vmem:[%s1640 + $0x70] sm:$0xff] %v1671
          %1688 = vst [vmem:[%s1640 + $0x78] sm:$0xff] %v1672
        $region64: #{tpu_custom_call.1} parent=39 // pred_fallthru
          _
        %p1689 = scmp.eq.s32.totalorder %s29, 1
        // Predicated region
        $region65: #{tpu_custom_call.1} parent=39 // pred_check
          %p1690 = pneg %p1689
        $region66: #{tpu_custom_call.1} parent=39 // pred_check_branch
          %1692 = sbr.rel (%p1690) target = $region68
        $region67: #{tpu_custom_call.1} parent=39 // pred_region
          %s1693 = scalar_lea.vmem [#allocation4], %s372
          %v1694 = vld [vmem:[%s1693] sm:$0xff]
          %v1695 = vld [vmem:[%s1693 + $0x8] sm:$0xff]
          %v1696 = vld [vmem:[%s1693 + $0x10] sm:$0xff]
          %v1697 = vld [vmem:[%s1693 + $0x18] sm:$0xff]
          %v1698 = vld [vmem:[%s1693 + $0x20] sm:$0xff]
          %v1699 = vld [vmem:[%s1693 + $0x28] sm:$0xff]
          %v1700 = vld [vmem:[%s1693 + $0x30] sm:$0xff]
          %v1701 = vld [vmem:[%s1693 + $0x38] sm:$0xff]
          %v1702 = vld [vmem:[%s1693 + $0x40] sm:$0xff]
          %v1703 = vld [vmem:[%s1693 + $0x48] sm:$0xff]
          %v1704 = vld [vmem:[%s1693 + $0x50] sm:$0xff]
          %v1705 = vld [vmem:[%s1693 + $0x58] sm:$0xff]
          %v1706 = vld [vmem:[%s1693 + $0x60] sm:$0xff]
          %v1707 = vld [vmem:[%s1693 + $0x68] sm:$0xff]
          %v1708 = vld [vmem:[%s1693 + $0x70] sm:$0xff]
          %v1709 = vld [vmem:[%s1693 + $0x78] sm:$0xff]
          %v1710 = vld [vmem:[%s369] sm:$0x1]
          %v1712 = vlaneseq
          %v1713 = vshrl.u32 %v1712, 7
          %v1714 = vsub.s32 0, %v1713
          %v1715 = vrot.slane %v1710, %v1714
          %v1717 = vadd.f32 %v1694, %v1715
          %v1718 = vadd.f32 %v1695, %v1715
          %v1719 = vadd.f32 %v1696, %v1715
          %v1720 = vadd.f32 %v1697, %v1715
          %v1721 = vadd.f32 %v1698, %v1715
          %v1722 = vadd.f32 %v1699, %v1715
          %v1723 = vadd.f32 %v1700, %v1715
          %v1724 = vadd.f32 %v1701, %v1715
          %v1725 = vadd.f32 %v1702, %v1715
          %v1726 = vadd.f32 %v1703, %v1715
          %v1727 = vadd.f32 %v1704, %v1715
          %v1728 = vadd.f32 %v1705, %v1715
          %v1729 = vadd.f32 %v1706, %v1715
          %v1730 = vadd.f32 %v1707, %v1715
          %v1731 = vadd.f32 %v1708, %v1715
          %v1732 = vadd.f32 %v1709, %v1715
          %v1733 = vmax.f32 %v1717, 0.0
          %v1734 = vmax.f32 %v1718, 0.0
          %v1735 = vmax.f32 %v1719, 0.0
          %v1736 = vmax.f32 %v1720, 0.0
          %v1737 = vmax.f32 %v1721, 0.0
          %v1738 = vmax.f32 %v1722, 0.0
          %v1739 = vmax.f32 %v1723, 0.0
          %v1740 = vmax.f32 %v1724, 0.0
          %v1741 = vmax.f32 %v1725, 0.0
          %v1742 = vmax.f32 %v1726, 0.0
          %v1743 = vmax.f32 %v1727, 0.0
          %v1744 = vmax.f32 %v1728, 0.0
          %v1745 = vmax.f32 %v1729, 0.0
          %v1746 = vmax.f32 %v1730, 0.0
          %v1747 = vmax.f32 %v1731, 0.0
          %v1748 = vmax.f32 %v1732, 0.0
          %s1749 = scalar_lea.vmem [#allocation2], %s372
          %1750 = vst [vmem:[%s1749] sm:$0xff] %v1733
          %1751 = vst [vmem:[%s1749 + $0x8] sm:$0xff] %v1734
          %1752 = vst [vmem:[%s1749 + $0x10] sm:$0xff] %v1735
          %1753 = vst [vmem:[%s1749 + $0x18] sm:$0xff] %v1736
          %1754 = vst [vmem:[%s1749 + $0x20] sm:$0xff] %v1737
          %1755 = vst [vmem:[%s1749 + $0x28] sm:$0xff] %v1738
          %1756 = vst [vmem:[%s1749 + $0x30] sm:$0xff] %v1739
          %1757 = vst [vmem:[%s1749 + $0x38] sm:$0xff] %v1740
          %1758 = vst [vmem:[%s1749 + $0x40] sm:$0xff] %v1741
          %1759 = vst [vmem:[%s1749 + $0x48] sm:$0xff] %v1742
          %1760 = vst [vmem:[%s1749 + $0x50] sm:$0xff] %v1743
          %1761 = vst [vmem:[%s1749 + $0x58] sm:$0xff] %v1744
          %1762 = vst [vmem:[%s1749 + $0x60] sm:$0xff] %v1745
          %1763 = vst [vmem:[%s1749 + $0x68] sm:$0xff] %v1746
          %1764 = vst [vmem:[%s1749 + $0x70] sm:$0xff] %v1747
          %1765 = vst [vmem:[%s1749 + $0x78] sm:$0xff] %v1748
          %1766 = vst [vmem:[%s345] sm:$0xff] %v1733
          %1767 = vst [vmem:[%s345 + $0x8] sm:$0xff] %v1734
          %1768 = vst [vmem:[%s345 + $0x10] sm:$0xff] %v1735
          %1769 = vst [vmem:[%s345 + $0x18] sm:$0xff] %v1736
          %1770 = vst [vmem:[%s345 + $0x20] sm:$0xff] %v1737
          %1771 = vst [vmem:[%s345 + $0x28] sm:$0xff] %v1738
          %1772 = vst [vmem:[%s345 + $0x30] sm:$0xff] %v1739
          %1773 = vst [vmem:[%s345 + $0x38] sm:$0xff] %v1740
          %1774 = vst [vmem:[%s345 + $0x40] sm:$0xff] %v1741
          %1775 = vst [vmem:[%s345 + $0x48] sm:$0xff] %v1742
          %1776 = vst [vmem:[%s345 + $0x50] sm:$0xff] %v1743
          %1777 = vst [vmem:[%s345 + $0x58] sm:$0xff] %v1744
          %1778 = vst [vmem:[%s345 + $0x60] sm:$0xff] %v1745
          %1779 = vst [vmem:[%s345 + $0x68] sm:$0xff] %v1746
          %1780 = vst [vmem:[%s345 + $0x70] sm:$0xff] %v1747
          %1781 = vst [vmem:[%s345 + $0x78] sm:$0xff] %v1748
        $region68: #{tpu_custom_call.1} parent=39 // pred_fallthru
          _
        %s1782 = sand.u32 %s181, 1
        %s1783 = scalar_lea.sflag [#allocation7], %s1782
        %s1784 = sand.u32 %s181, 1
        %s1785 = smul.addr %s1784, 128
        %s1786 = scalar_lea.vmem [#allocation10], %s1785
        // Predicated region
        $region69: #{tpu_custom_call.1} parent=39 // pred_check
          %p1787 = pneg %p191
        $region70: #{tpu_custom_call.1} parent=39 // pred_check_branch
          %1789 = sbr.rel (%p1787) target = $region72
        $region71: #{tpu_custom_call.1} parent=39 // pred_region
          %s1790 = smul.u32 16, %s30
          %s1792 = ssub.s32 2048, 2048
          %1793 = vsyncadd %s1783, %s1792
          %s1794 = smul.addr %s1790, 128
          %s1795 = scalar_lea.hbm %s5, %s1794
          %s1796 = sshll.u32 %s1786, 4
          %s1797 = int_to_ptr.vmem [resolvable:$true] %s1796
          %1802 = dma.vmem_to_hbm [thread:$0]  %s1797, 2048, %s1795, %s1783, 128, 128, 8
        $region72: #{tpu_custom_call.1} parent=39 // pred_fallthru
          _
      $region40: #{tpu_custom_call.1} parent=5 // pred_fallthru
        _
      %p1803 = scmp.le.s32.totalorder 2, %s18
      // Predicated region
      $region73: #{tpu_custom_call.1} parent=5 // pred_check
        %p1804 = pneg %p1803
      $region74: #{tpu_custom_call.1} parent=5 // pred_check_branch
        %1806 = sbr.rel (%p1804) target = $region76
      $region75: #{tpu_custom_call.1} parent=5 // pred_region
        %s1807 = ssub.s32 %s18, 2
        // Predicated region
        $region77: #{tpu_custom_call.1} parent=75 // pred_check
          %p1808 = pneg %p197
        $region78: #{tpu_custom_call.1} parent=75 // pred_check_branch
          %1810 = sbr.rel (%p1808) target = $region80
        $region79: #{tpu_custom_call.1} parent=75 // pred_region
          %s1811 = sand.u32 %s182, 1
          %s1812 = scalar_lea.sflag [#allocation7], %s1811
          %s1813 = sand.u32 %s182, 1
          %s1814 = smul.addr %s1813, 128
          %s1815 = scalar_lea.vmem [#allocation10], %s1814
          %1816 = dma.done %s1812, 2048
        $region80: #{tpu_custom_call.1} parent=75 // pred_fallthru
          _
      $region76: #{tpu_custom_call.1} parent=5 // pred_fallthru
        _
    $region6: #{tpu_custom_call.1} parent=1 // loop_footer
      %s22 = sadd.s32 1, %s18
    $region7: #{tpu_custom_call.1} parent=1 // loop_footer_branch
      %17 = sbr.rel target = $region3
    $region8: #{tpu_custom_call.1} parent=1 // loop_exit
      _
    %1817 = vsyncpa [#allocation6], 1
    %s1818 = scalar_lea.sflag [#allocation6], 1
    %1819 = vsyncpa %s1818, 1
    %1820 = vsyncpa [#allocation9], 1
    %s1821 = scalar_lea.sflag [#allocation9], 1
    %1822 = vsyncpa %s1821, 1
    %1823 = vsyncpa [#allocation7], 1
    %s1824 = scalar_lea.sflag [#allocation7], 1
    %1825 = vsyncpa %s1824, 1

</llo_original>
